<compile_context>
chip_gen: v6e
topology: v6e:2x2x1
jax: 0.10.0
libtpu: 0.0.40
codegen_flags: <defaults>
</compile_context>

<pallas_src>
import math

import jax
import jax.numpy as jnp
from jax.experimental import pallas as pl
from jax.experimental.pallas import tpu as pltpu

STATE_DIM = 20          # env.state_dim (synthetic choice)
OUT_SIZE = 5
HIDDEN = 32

IN_DIM = STATE_DIM + 2                      # 22
IN_PAD = ((IN_DIM + 7) // 8) * 8            # 24 (sublane-aligned K for the first dot)

# ---- packed weight slab row offsets (all 8-row aligned) ------------------------
_R_W1 = 0
_R_W2 = _R_W1 + IN_PAD                      # 24
_R_W3 = _R_W2 + 128                         # 152
_R_WIH = _R_W3 + 128                        # 280
_R_WHH = _R_WIH + 128                       # 408
_R_WHEAD = _R_WHH + HIDDEN                  # 440
_R_BIAS = _R_WHEAD + HIDDEN                 # 472
_SLAB_ROWS = _R_BIAS + 8                    # 480

# ---- packed output lane offsets -------------------------------------------------
_O_Q = 0
_O_H = 32
_O_C = 64

_VMEM = pl.BlockSpec(memory_space=pltpu.MemorySpace.VMEM)


# ----------------------------- fused kernel -----------------------------------

def _qnet_kernel(x_ref, hc0_ref, w_ref, out_ref):
    rows = x_ref.shape[0]          # T * BP
    BP = hc0_ref.shape[0]          # batch padded to multiple of 8
    T = rows // BP
    H = HIDDEN

    # Static, 8-row-aligned views into the packed weight slab (free).
    w1 = w_ref[_R_W1:_R_W2, :]               # (IN_PAD, 128)  lanes 64: zero
    w2 = w_ref[_R_W2:_R_W3, :]               # (128, 128)     rows 64: zero
    w3 = w_ref[_R_W3:_R_WIH, :]              # (128, 128)
    w_ih = w_ref[_R_WIH:_R_WHH, :]           # (128, 4H) i/f/o cols pre-scaled x0.5
    w_hh = w_ref[_R_WHH:_R_WHEAD, :]         # (H, 4H)   i/f/o cols pre-scaled x0.5
    w_head = w_ref[_R_WHEAD:_R_BIAS, :]      # (H, 128)  cols 0:5 adv, col 5 val
    b1 = w_ref[_R_BIAS + 0:_R_BIAS + 1, :]
    b2 = w_ref[_R_BIAS + 1:_R_BIAS + 2, :]
    b3 = w_ref[_R_BIAS + 2:_R_BIAS + 3, :]
    b_lstm = w_ref[_R_BIAS + 3:_R_BIAS + 4, :]
    b_head = w_ref[_R_BIAS + 4:_R_BIAS + 5, :]

    # MLP fc1/relu/fc2/relu/fc3/relu over ALL rows (time-major: row = t*BP + b).
    x = x_ref[...]
    h1 = jnp.maximum(jnp.dot(x, w1, preferred_element_type=jnp.float32) + b1, 0.0)
    h2 = jnp.maximum(jnp.dot(h1, w2, preferred_element_type=jnp.float32) + b2, 0.0)
    feat = jnp.maximum(jnp.dot(h2, w3, preferred_element_type=jnp.float32) + b3, 0.0)

    # Hoisted LSTM input projection for all timesteps (one MXU call).
    gates_x = jnp.dot(feat, w_ih, preferred_element_type=jnp.float32) + b_lstm

    h = hc0_ref[:, 0:H]
    c = hc0_ref[:, H:2 * H]
    # Serial recurrence, fully unrolled (T small & static). Per step:
    # one tiny MXU dot + ONE full-width tanh + one tanh(c).
    for t in range(T):
        gates = (gates_x[t * BP:(t + 1) * BP, :]           # contiguous 8-sublane slice
                 + jnp.dot(h, w_hh, preferred_element_type=jnp.float32))
        th = jnp.tanh(gates)
        # i/f/o columns were pre-scaled by 0.5 => sigmoid(z) = 0.5*tanh(z/2) + 0.5.
        i = 0.5 * th[:, 0 * H:1 * H] + 0.5
        f = 0.5 * th[:, 1 * H:2 * H] + 0.5
        g = th[:, 2 * H:3 * H]
        o = 0.5 * th[:, 3 * H:4 * H] + 0.5
        c = f * c + i * g
        h = o * jnp.tanh(c)

    # For a 1-layer batch_first LSTM, lstm_out[:, T-1, :] == h_n == h.
    head = jnp.dot(h, w_head, preferred_element_type=jnp.float32) + b_head
    adv = head[:, :OUT_SIZE]
    val = head[:, OUT_SIZE:OUT_SIZE + 1]
    q = val + adv - jnp.mean(adv, axis=1, keepdims=True)   # dueling combine

    # One unmasked, lane-dense (BP,128) store: [q | pad | h | c | pad].
    out_ref[...] = jnp.concatenate(
        [q,
         jnp.zeros((BP, _O_H - OUT_SIZE), jnp.float32),
         h, c,
         jnp.zeros((BP, 128 - _O_C - H), jnp.float32)],
        axis=1)


# ----------------------------- wrapper -----------------------------------------

def q_net_forward(packed_w, state, pose, hidden_state, cell_state):
    """Mirrors Q_NET.forward.

    state : (B, T, STATE_DIM)   pose : (B, T, 2)
    hidden_state / cell_state : (1, B, HIDDEN)   (PyTorch LSTM convention)
    packed_w : (480, 128) slab from pack_params()
    returns (qout (B, OUT_SIZE), (h_n (1,B,HIDDEN), c_n (1,B,HIDDEN)))
    """
    B, T, _ = state.shape
    BP = ((B + 7) // 8) * 8

    # concat(state,pose), time-major rows, pad batch->BP and lanes->IN_PAD (all free XLA).
    x = jnp.concatenate([state, pose], axis=-1)                       # (B,T,IN_DIM)
    x = jnp.swapaxes(x, 0, 1)                                         # (T,B,IN_DIM)
    x = jnp.pad(x, ((0, 0), (0, BP - B), (0, IN_PAD - IN_DIM)))
    x = x.reshape(T * BP, IN_PAD)

    hc0 = jnp.concatenate([hidden_state[0], cell_state[0]], axis=1)   # (B, 2H)
    hc0 = jnp.pad(hc0, ((0, BP - B), (0, 0)))                         # (BP, 2H)

    rows = T * BP
    flops = int(2 * rows * (IN_PAD * 128 + 2 * 128 * 128 + 128 * 4 * HIDDEN)
                + 2 * T * BP * HIDDEN * 4 * HIDDEN
                + 2 * BP * HIDDEN * 128)
    transcendentals = int(T * BP * (4 * HIDDEN + HIDDEN))
    bytes_accessed = int(4 * (x.size + hc0.size + packed_w.size + BP * 128))

    out = pl.pallas_call(
        _qnet_kernel,
        out_shape=jax.ShapeDtypeStruct((BP, 128), jnp.float32),
        in_specs=[_VMEM, _VMEM, _VMEM],
        out_specs=_VMEM,
        cost_estimate=pl.CostEstimate(flops=flops,
                                      transcendentals=transcendentals,
                                      bytes_accessed=bytes_accessed),
    )(x, hc0, packed_w)

    q = out[:B, _O_Q:_O_Q + OUT_SIZE]
    h_n = out[:B, _O_H:_O_H + HIDDEN]
    c_n = out[:B, _O_C:_O_C + HIDDEN]
    return q, (h_n[None, :, :], c_n[None, :, :])


# ----------------------------- params / packing --------------------------------

def _xavier(key, din, dout, gain):
    bound = gain * math.sqrt(6.0 / (din + dout))
    return jax.random.uniform(key, (din, dout), jnp.float32, -bound, bound)


def init_params(key):
    """Standard (unpacked) params; reference uses these directly."""
    gain = math.sqrt(2.0)                    # calculate_gain('relu')
    ks = jax.random.split(key, 9)
    lb = 1.0 / math.sqrt(HIDDEN)
    return {
        "w1": _xavier(ks[0], IN_DIM, 64, gain),
        "b1": jnp.zeros((1, 64), jnp.float32),
        "w2": _xavier(ks[1], 64, 128, gain),
        "b2": jnp.zeros((1, 128), jnp.float32),
        "w3": _xavier(ks[2], 128, 128, gain),
        "b3": jnp.zeros((1, 128), jnp.float32),
        # LSTM weights stored transposed: x @ w_ih + h @ w_hh + b, gate order i,f,g,o.
        "w_ih": jax.random.uniform(ks[3], (128, 4 * HIDDEN), jnp.float32, -lb, lb),
        "w_hh": jax.random.uniform(ks[4], (HIDDEN, 4 * HIDDEN), jnp.float32, -lb, lb),
        # b_ih + b_hh folded (two independent draws, as in PyTorch).
        "b_lstm": (jax.random.uniform(ks[5], (1, 4 * HIDDEN), jnp.float32, -lb, lb)
                   + jax.random.uniform(ks[6], (1, 4 * HIDDEN), jnp.float32, -lb, lb)),
        "w_adv": _xavier(ks[7], HIDDEN, OUT_SIZE, gain),
        "b_adv": jnp.zeros((1, OUT_SIZE), jnp.float32),
        "w_val": _xavier(ks[8], HIDDEN, 1, gain),
        "b_val": jnp.zeros((1, 1), jnp.float32),
    }


def pack_params(params):
    """Pack all weights/biases into one (480,128) lane-dense slab.

    Also folds the 0.5 scale into the i/f/o columns of w_ih/w_hh/b_lstm for the
    kernel's tanh-only gate computation (sigmoid(z) = 0.5*tanh(z/2) + 0.5).
    """
    H = HIDDEN
    scale = jnp.full((4 * H,), 0.5, jnp.float32).at[2 * H:3 * H].set(1.0)

    def pad_to(a, r, c):
        return jnp.pad(a, ((0, r - a.shape[0]), (0, c - a.shape[1])))

    w1p = pad_to(params["w1"], IN_PAD, 128)
    w2p = pad_to(params["w2"], 128, 128)
    w3p = params["w3"]
    w_ihp = params["w_ih"] * scale[None, :]
    w_hhp = params["w_hh"] * scale[None, :]
    w_headp = pad_to(jnp.concatenate([params["w_adv"], params["w_val"]], axis=1),
                     H, 128)
    b1p = pad_to(params["b1"], 1, 128)
    b_lstmp = params["b_lstm"] * scale[None, :]
    b_headp = pad_to(jnp.concatenate([params["b_adv"], params["b_val"]], axis=1),
                     1, 128)
    biases = jnp.concatenate(
        [b1p, params["b2"], params["b3"], b_lstmp, b_headp,
         jnp.zeros((3, 128), jnp.float32)], axis=0)

    slab = jnp.concatenate([w1p, w2p, w3p, w_ihp, w_hhp, w_headp, biases], axis=0)
    assert slab.shape == (_SLAB_ROWS, 128)
    return slab


# ----------------------------- pure-JAX reference ------------------------------

def q_net_reference(params, state, pose, hidden_state, cell_state):
    B, T, _ = state.shape
    x = jnp.concatenate(
        [state.reshape(B * T, STATE_DIM), pose.reshape(B * T, 2)], axis=1)
    h = jnp.maximum(x @ params["w1"] + params["b1"], 0.0)
    h = jnp.maximum(h @ params["w2"] + params["b2"], 0.0)
    h = jnp.maximum(h @ params["w3"] + params["b3"], 0.0)
    feat = h.reshape(B, T, 128)

    hh, cc = hidden_state[0], cell_state[0]
    H = HIDDEN
    for t in range(T):
        gates = feat[:, t, :] @ params["w_ih"] + hh @ params["w_hh"] + params["b_lstm"]
        i = jax.nn.sigmoid(gates[:, 0 * H:1 * H])
        f = jax.nn.sigmoid(gates[:, 1 * H:2 * H])
        g = jnp.tanh(gates[:, 2 * H:3 * H])
        o = jax.nn.sigmoid(gates[:, 3 * H:4 * H])
        cc = f * cc + i * g
        hh = o * jnp.tanh(cc)

    adv = hh @ params["w_adv"] + params["b_adv"]
    val = hh @ params["w_val"] + params["b_val"]
    q = val + adv - jnp.mean(adv, axis=1, keepdims=True)
    return q, (hh[None], cc[None])


# ----------------------------- main -------------------------------------------

if __name__ == "__main__":
    key = jax.random.PRNGKey(0)
    k_param, k_state, k_pose = jax.random.split(key, 3)

    B, T = 2, 8
    params = init_params(k_param)
    packed_w = pack_params(params)
    state = jax.random.normal(k_state, (B, T, STATE_DIM), jnp.float32)
    pose = jax.random.normal(k_pose, (B, T, 2), jnp.float32)
    h0 = jnp.zeros((1, B, HIDDEN), jnp.float32)
    c0 = jnp.zeros((1, B, HIDDEN), jnp.float32)

    qout, (h_n, c_n) = jax.block_until_ready(
        q_net_forward(packed_w, state, pose, h0, c0))

    q_ref, (h_ref, c_ref) = q_net_reference(params, state, pose, h0, c0)
    assert qout.shape == (B, OUT_SIZE)
    assert h_n.shape == (1, B, HIDDEN) and c_n.shape == (1, B, HIDDEN)
    assert jnp.allclose(qout, q_ref, atol=1e-4)
    assert jnp.allclose(h_n, h_ref, atol=1e-4)
    assert jnp.allclose(c_n, c_ref, atol=1e-4)

    print("KERNEL_OK")
</pallas_src>

<mosaic_0001>
module attributes {stable_mosaic.version = 11 : i64} {
  func.func @_qnet_kernel(%arg0: memref<64x24xf32, #tpu.memory_space<vmem>>, %arg1: memref<8x64xf32, #tpu.memory_space<vmem>>, %arg2: memref<480x128xf32, #tpu.memory_space<vmem>>, %arg3: memref<8x128xf32, #tpu.memory_space<vmem>>) attributes {dimension_semantics = [], scalar_prefetch = 0 : i64, scratch_operands = 0 : i64, tpu.core_type = #tpu.core_type<tc>} {
    %c0 = arith.constant 0 : index
    %c0_0 = arith.constant 0 : index
    %0 = vector.load %arg2[%c0, %c0_0] : memref<480x128xf32, #tpu.memory_space<vmem>>, vector<24x128xf32>
    %c24 = arith.constant 24 : index
    %c0_1 = arith.constant 0 : index
    %1 = vector.load %arg2[%c24, %c0_1] : memref<480x128xf32, #tpu.memory_space<vmem>>, vector<128x128xf32>
    %c152 = arith.constant 152 : index
    %c0_2 = arith.constant 0 : index
    %2 = vector.load %arg2[%c152, %c0_2] : memref<480x128xf32, #tpu.memory_space<vmem>>, vector<128x128xf32>
    %c280 = arith.constant 280 : index
    %c0_3 = arith.constant 0 : index
    %3 = vector.load %arg2[%c280, %c0_3] : memref<480x128xf32, #tpu.memory_space<vmem>>, vector<128x128xf32>
    %c408 = arith.constant 408 : index
    %c0_4 = arith.constant 0 : index
    %4 = vector.load %arg2[%c408, %c0_4] : memref<480x128xf32, #tpu.memory_space<vmem>>, vector<32x128xf32>
    %c440 = arith.constant 440 : index
    %c0_5 = arith.constant 0 : index
    %5 = vector.load %arg2[%c440, %c0_5] : memref<480x128xf32, #tpu.memory_space<vmem>>, vector<32x128xf32>
    %c472 = arith.constant 472 : index
    %c0_6 = arith.constant 0 : index
    %6 = vector.load %arg2[%c472, %c0_6] : memref<480x128xf32, #tpu.memory_space<vmem>>, vector<1x128xf32>
    %c473 = arith.constant 473 : index
    %c0_7 = arith.constant 0 : index
    %7 = vector.load %arg2[%c473, %c0_7] : memref<480x128xf32, #tpu.memory_space<vmem>>, vector<1x128xf32>
    %c474 = arith.constant 474 : index
    %c0_8 = arith.constant 0 : index
    %8 = vector.load %arg2[%c474, %c0_8] : memref<480x128xf32, #tpu.memory_space<vmem>>, vector<1x128xf32>
    %c475 = arith.constant 475 : index
    %c0_9 = arith.constant 0 : index
    %9 = vector.load %arg2[%c475, %c0_9] : memref<480x128xf32, #tpu.memory_space<vmem>>, vector<1x128xf32>
    %c476 = arith.constant 476 : index
    %c0_10 = arith.constant 0 : index
    %10 = vector.load %arg2[%c476, %c0_10] : memref<480x128xf32, #tpu.memory_space<vmem>>, vector<1x128xf32>
    %c0_11 = arith.constant 0 : index
    %c0_12 = arith.constant 0 : index
    %11 = vector.load %arg0[%c0_11, %c0_12] : memref<64x24xf32, #tpu.memory_space<vmem>>, vector<64x24xf32>
    %cst = arith.constant dense<0.000000e+00> : vector<64x128xf32>
    %12 = tpu.matmul %11, %0, %cst {dimension_numbers = #tpu.dot_dimension_numbers<[1], [0], [0], [1], [0, 0, 1, 1], [], []>} : vector<64x24xf32>, vector<24x128xf32>, vector<64x128xf32> -> vector<64x128xf32>
    %13 = vector.broadcast %6 : vector<1x128xf32> to vector<64x128xf32>
    %14 = arith.addf %12, %13 : vector<64x128xf32>
    %cst_13 = arith.constant 0.000000e+00 : f32
    %15 = vector.broadcast %cst_13 : f32 to vector<64x128xf32>
    %16 = arith.maximumf %14, %15 : vector<64x128xf32>
    %cst_14 = arith.constant dense<0.000000e+00> : vector<64x128xf32>
    %17 = tpu.matmul %16, %1, %cst_14 {dimension_numbers = #tpu.dot_dimension_numbers<[1], [0], [0], [1], [0, 0, 1, 1], [], []>} : vector<64x128xf32>, vector<128x128xf32>, vector<64x128xf32> -> vector<64x128xf32>
    %18 = vector.broadcast %7 : vector<1x128xf32> to vector<64x128xf32>
    %19 = arith.addf %17, %18 : vector<64x128xf32>
    %cst_15 = arith.constant 0.000000e+00 : f32
    %20 = vector.broadcast %cst_15 : f32 to vector<64x128xf32>
    %21 = arith.maximumf %19, %20 : vector<64x128xf32>
    %cst_16 = arith.constant dense<0.000000e+00> : vector<64x128xf32>
    %22 = tpu.matmul %21, %2, %cst_16 {dimension_numbers = #tpu.dot_dimension_numbers<[1], [0], [0], [1], [0, 0, 1, 1], [], []>} : vector<64x128xf32>, vector<128x128xf32>, vector<64x128xf32> -> vector<64x128xf32>
    %23 = vector.broadcast %8 : vector<1x128xf32> to vector<64x128xf32>
    %24 = arith.addf %22, %23 : vector<64x128xf32>
    %cst_17 = arith.constant 0.000000e+00 : f32
    %25 = vector.broadcast %cst_17 : f32 to vector<64x128xf32>
    %26 = arith.maximumf %24, %25 : vector<64x128xf32>
    %cst_18 = arith.constant dense<0.000000e+00> : vector<64x128xf32>
    %27 = tpu.matmul %26, %3, %cst_18 {dimension_numbers = #tpu.dot_dimension_numbers<[1], [0], [0], [1], [0, 0, 1, 1], [], []>} : vector<64x128xf32>, vector<128x128xf32>, vector<64x128xf32> -> vector<64x128xf32>
    %28 = vector.broadcast %9 : vector<1x128xf32> to vector<64x128xf32>
    %29 = arith.addf %27, %28 : vector<64x128xf32>
    %c0_19 = arith.constant 0 : index
    %c0_20 = arith.constant 0 : index
    %30 = vector.load %arg1[%c0_19, %c0_20] : memref<8x64xf32, #tpu.memory_space<vmem>>, vector<8x32xf32>
    %c0_21 = arith.constant 0 : index
    %c32 = arith.constant 32 : index
    %31 = vector.load %arg1[%c0_21, %c32] : memref<8x64xf32, #tpu.memory_space<vmem>>, vector<8x32xf32>
    %32 = vector.extract_strided_slice %29 {offsets = [0, 0], sizes = [8, 128], strides = [1, 1]} : vector<64x128xf32> to vector<8x128xf32>
    %cst_22 = arith.constant dense<0.000000e+00> : vector<8x128xf32>
    %33 = tpu.matmul %30, %4, %cst_22 {dimension_numbers = #tpu.dot_dimension_numbers<[1], [0], [0], [1], [0, 0, 1, 1], [], []>} : vector<8x32xf32>, vector<32x128xf32>, vector<8x128xf32> -> vector<8x128xf32>
    %34 = arith.addf %32, %33 : vector<8x128xf32>
    %35 = math.tanh %34 : vector<8x128xf32>
    %36 = vector.extract_strided_slice %35 {offsets = [0, 0], sizes = [8, 32], strides = [1, 1]} : vector<8x128xf32> to vector<8x32xf32>
    %cst_23 = arith.constant 5.000000e-01 : f32
    %37 = vector.broadcast %cst_23 : f32 to vector<8x32xf32>
    %38 = arith.mulf %37, %36 : vector<8x32xf32>
    %cst_24 = arith.constant 5.000000e-01 : f32
    %39 = vector.broadcast %cst_24 : f32 to vector<8x32xf32>
    %40 = arith.addf %38, %39 : vector<8x32xf32>
    %41 = vector.extract_strided_slice %35 {offsets = [0, 32], sizes = [8, 32], strides = [1, 1]} : vector<8x128xf32> to vector<8x32xf32>
    %cst_25 = arith.constant 5.000000e-01 : f32
    %42 = vector.broadcast %cst_25 : f32 to vector<8x32xf32>
    %43 = arith.mulf %42, %41 : vector<8x32xf32>
    %cst_26 = arith.constant 5.000000e-01 : f32
    %44 = vector.broadcast %cst_26 : f32 to vector<8x32xf32>
    %45 = arith.addf %43, %44 : vector<8x32xf32>
    %46 = vector.extract_strided_slice %35 {offsets = [0, 64], sizes = [8, 32], strides = [1, 1]} : vector<8x128xf32> to vector<8x32xf32>
    %47 = vector.extract_strided_slice %35 {offsets = [0, 96], sizes = [8, 32], strides = [1, 1]} : vector<8x128xf32> to vector<8x32xf32>
    %cst_27 = arith.constant 5.000000e-01 : f32
    %48 = vector.broadcast %cst_27 : f32 to vector<8x32xf32>
    %49 = arith.mulf %48, %47 : vector<8x32xf32>
    %cst_28 = arith.constant 5.000000e-01 : f32
    %50 = vector.broadcast %cst_28 : f32 to vector<8x32xf32>
    %51 = arith.addf %49, %50 : vector<8x32xf32>
    %52 = arith.mulf %45, %31 : vector<8x32xf32>
    %53 = arith.mulf %40, %46 : vector<8x32xf32>
    %54 = arith.addf %52, %53 : vector<8x32xf32>
    %55 = math.tanh %54 : vector<8x32xf32>
    %56 = arith.mulf %51, %55 : vector<8x32xf32>
    %57 = vector.extract_strided_slice %29 {offsets = [8, 0], sizes = [8, 128], strides = [1, 1]} : vector<64x128xf32> to vector<8x128xf32>
    %cst_29 = arith.constant dense<0.000000e+00> : vector<8x128xf32>
    %58 = tpu.matmul %56, %4, %cst_29 {dimension_numbers = #tpu.dot_dimension_numbers<[1], [0], [0], [1], [0, 0, 1, 1], [], []>} : vector<8x32xf32>, vector<32x128xf32>, vector<8x128xf32> -> vector<8x128xf32>
    %59 = arith.addf %57, %58 : vector<8x128xf32>
    %60 = math.tanh %59 : vector<8x128xf32>
    %61 = vector.extract_strided_slice %60 {offsets = [0, 0], sizes = [8, 32], strides = [1, 1]} : vector<8x128xf32> to vector<8x32xf32>
    %cst_30 = arith.constant 5.000000e-01 : f32
    %62 = vector.broadcast %cst_30 : f32 to vector<8x32xf32>
    %63 = arith.mulf %62, %61 : vector<8x32xf32>
    %cst_31 = arith.constant 5.000000e-01 : f32
    %64 = vector.broadcast %cst_31 : f32 to vector<8x32xf32>
    %65 = arith.addf %63, %64 : vector<8x32xf32>
    %66 = vector.extract_strided_slice %60 {offsets = [0, 32], sizes = [8, 32], strides = [1, 1]} : vector<8x128xf32> to vector<8x32xf32>
    %cst_32 = arith.constant 5.000000e-01 : f32
    %67 = vector.broadcast %cst_32 : f32 to vector<8x32xf32>
    %68 = arith.mulf %67, %66 : vector<8x32xf32>
    %cst_33 = arith.constant 5.000000e-01 : f32
    %69 = vector.broadcast %cst_33 : f32 to vector<8x32xf32>
    %70 = arith.addf %68, %69 : vector<8x32xf32>
    %71 = vector.extract_strided_slice %60 {offsets = [0, 64], sizes = [8, 32], strides = [1, 1]} : vector<8x128xf32> to vector<8x32xf32>
    %72 = vector.extract_strided_slice %60 {offsets = [0, 96], sizes = [8, 32], strides = [1, 1]} : vector<8x128xf32> to vector<8x32xf32>
    %cst_34 = arith.constant 5.000000e-01 : f32
    %73 = vector.broadcast %cst_34 : f32 to vector<8x32xf32>
    %74 = arith.mulf %73, %72 : vector<8x32xf32>
    %cst_35 = arith.constant 5.000000e-01 : f32
    %75 = vector.broadcast %cst_35 : f32 to vector<8x32xf32>
    %76 = arith.addf %74, %75 : vector<8x32xf32>
    %77 = arith.mulf %70, %54 : vector<8x32xf32>
    %78 = arith.mulf %65, %71 : vector<8x32xf32>
    %79 = arith.addf %77, %78 : vector<8x32xf32>
    %80 = math.tanh %79 : vector<8x32xf32>
    %81 = arith.mulf %76, %80 : vector<8x32xf32>
    %82 = vector.extract_strided_slice %29 {offsets = [16, 0], sizes = [8, 128], strides = [1, 1]} : vector<64x128xf32> to vector<8x128xf32>
    %cst_36 = arith.constant dense<0.000000e+00> : vector<8x128xf32>
    %83 = tpu.matmul %81, %4, %cst_36 {dimension_numbers = #tpu.dot_dimension_numbers<[1], [0], [0], [1], [0, 0, 1, 1], [], []>} : vector<8x32xf32>, vector<32x128xf32>, vector<8x128xf32> -> vector<8x128xf32>
    %84 = arith.addf %82, %83 : vector<8x128xf32>
    %85 = math.tanh %84 : vector<8x128xf32>
    %86 = vector.extract_strided_slice %85 {offsets = [0, 0], sizes = [8, 32], strides = [1, 1]} : vector<8x128xf32> to vector<8x32xf32>
    %cst_37 = arith.constant 5.000000e-01 : f32
    %87 = vector.broadcast %cst_37 : f32 to vector<8x32xf32>
    %88 = arith.mulf %87, %86 : vector<8x32xf32>
    %cst_38 = arith.constant 5.000000e-01 : f32
    %89 = vector.broadcast %cst_38 : f32 to vector<8x32xf32>
    %90 = arith.addf %88, %89 : vector<8x32xf32>
    %91 = vector.extract_strided_slice %85 {offsets = [0, 32], sizes = [8, 32], strides = [1, 1]} : vector<8x128xf32> to vector<8x32xf32>
    %cst_39 = arith.constant 5.000000e-01 : f32
    %92 = vector.broadcast %cst_39 : f32 to vector<8x32xf32>
    %93 = arith.mulf %92, %91 : vector<8x32xf32>
    %cst_40 = arith.constant 5.000000e-01 : f32
    %94 = vector.broadcast %cst_40 : f32 to vector<8x32xf32>
    %95 = arith.addf %93, %94 : vector<8x32xf32>
    %96 = vector.extract_strided_slice %85 {offsets = [0, 64], sizes = [8, 32], strides = [1, 1]} : vector<8x128xf32> to vector<8x32xf32>
    %97 = vector.extract_strided_slice %85 {offsets = [0, 96], sizes = [8, 32], strides = [1, 1]} : vector<8x128xf32> to vector<8x32xf32>
    %cst_41 = arith.constant 5.000000e-01 : f32
    %98 = vector.broadcast %cst_41 : f32 to vector<8x32xf32>
    %99 = arith.mulf %98, %97 : vector<8x32xf32>
    %cst_42 = arith.constant 5.000000e-01 : f32
    %100 = vector.broadcast %cst_42 : f32 to vector<8x32xf32>
    %101 = arith.addf %99, %100 : vector<8x32xf32>
    %102 = arith.mulf %95, %79 : vector<8x32xf32>
    %103 = arith.mulf %90, %96 : vector<8x32xf32>
    %104 = arith.addf %102, %103 : vector<8x32xf32>
    %105 = math.tanh %104 : vector<8x32xf32>
    %106 = arith.mulf %101, %105 : vector<8x32xf32>
    %107 = vector.extract_strided_slice %29 {offsets = [24, 0], sizes = [8, 128], strides = [1, 1]} : vector<64x128xf32> to vector<8x128xf32>
    %cst_43 = arith.constant dense<0.000000e+00> : vector<8x128xf32>
    %108 = tpu.matmul %106, %4, %cst_43 {dimension_numbers = #tpu.dot_dimension_numbers<[1], [0], [0], [1], [0, 0, 1, 1], [], []>} : vector<8x32xf32>, vector<32x128xf32>, vector<8x128xf32> -> vector<8x128xf32>
    %109 = arith.addf %107, %108 : vector<8x128xf32>
    %110 = math.tanh %109 : vector<8x128xf32>
    %111 = vector.extract_strided_slice %110 {offsets = [0, 0], sizes = [8, 32], strides = [1, 1]} : vector<8x128xf32> to vector<8x32xf32>
    %cst_44 = arith.constant 5.000000e-01 : f32
    %112 = vector.broadcast %cst_44 : f32 to vector<8x32xf32>
    %113 = arith.mulf %112, %111 : vector<8x32xf32>
    %cst_45 = arith.constant 5.000000e-01 : f32
    %114 = vector.broadcast %cst_45 : f32 to vector<8x32xf32>
    %115 = arith.addf %113, %114 : vector<8x32xf32>
    %116 = vector.extract_strided_slice %110 {offsets = [0, 32], sizes = [8, 32], strides = [1, 1]} : vector<8x128xf32> to vector<8x32xf32>
    %cst_46 = arith.constant 5.000000e-01 : f32
    %117 = vector.broadcast %cst_46 : f32 to vector<8x32xf32>
    %118 = arith.mulf %117, %116 : vector<8x32xf32>
    %cst_47 = arith.constant 5.000000e-01 : f32
    %119 = vector.broadcast %cst_47 : f32 to vector<8x32xf32>
    %120 = arith.addf %118, %119 : vector<8x32xf32>
    %121 = vector.extract_strided_slice %110 {offsets = [0, 64], sizes = [8, 32], strides = [1, 1]} : vector<8x128xf32> to vector<8x32xf32>
    %122 = vector.extract_strided_slice %110 {offsets = [0, 96], sizes = [8, 32], strides = [1, 1]} : vector<8x128xf32> to vector<8x32xf32>
    %cst_48 = arith.constant 5.000000e-01 : f32
    %123 = vector.broadcast %cst_48 : f32 to vector<8x32xf32>
    %124 = arith.mulf %123, %122 : vector<8x32xf32>
    %cst_49 = arith.constant 5.000000e-01 : f32
    %125 = vector.broadcast %cst_49 : f32 to vector<8x32xf32>
    %126 = arith.addf %124, %125 : vector<8x32xf32>
    %127 = arith.mulf %120, %104 : vector<8x32xf32>
    %128 = arith.mulf %115, %121 : vector<8x32xf32>
    %129 = arith.addf %127, %128 : vector<8x32xf32>
    %130 = math.tanh %129 : vector<8x32xf32>
    %131 = arith.mulf %126, %130 : vector<8x32xf32>
    %132 = vector.extract_strided_slice %29 {offsets = [32, 0], sizes = [8, 128], strides = [1, 1]} : vector<64x128xf32> to vector<8x128xf32>
    %cst_50 = arith.constant dense<0.000000e+00> : vector<8x128xf32>
    %133 = tpu.matmul %131, %4, %cst_50 {dimension_numbers = #tpu.dot_dimension_numbers<[1], [0], [0], [1], [0, 0, 1, 1], [], []>} : vector<8x32xf32>, vector<32x128xf32>, vector<8x128xf32> -> vector<8x128xf32>
    %134 = arith.addf %132, %133 : vector<8x128xf32>
    %135 = math.tanh %134 : vector<8x128xf32>
    %136 = vector.extract_strided_slice %135 {offsets = [0, 0], sizes = [8, 32], strides = [1, 1]} : vector<8x128xf32> to vector<8x32xf32>
    %cst_51 = arith.constant 5.000000e-01 : f32
    %137 = vector.broadcast %cst_51 : f32 to vector<8x32xf32>
    %138 = arith.mulf %137, %136 : vector<8x32xf32>
    %cst_52 = arith.constant 5.000000e-01 : f32
    %139 = vector.broadcast %cst_52 : f32 to vector<8x32xf32>
    %140 = arith.addf %138, %139 : vector<8x32xf32>
    %141 = vector.extract_strided_slice %135 {offsets = [0, 32], sizes = [8, 32], strides = [1, 1]} : vector<8x128xf32> to vector<8x32xf32>
    %cst_53 = arith.constant 5.000000e-01 : f32
    %142 = vector.broadcast %cst_53 : f32 to vector<8x32xf32>
    %143 = arith.mulf %142, %141 : vector<8x32xf32>
    %cst_54 = arith.constant 5.000000e-01 : f32
    %144 = vector.broadcast %cst_54 : f32 to vector<8x32xf32>
    %145 = arith.addf %143, %144 : vector<8x32xf32>
    %146 = vector.extract_strided_slice %135 {offsets = [0, 64], sizes = [8, 32], strides = [1, 1]} : vector<8x128xf32> to vector<8x32xf32>
    %147 = vector.extract_strided_slice %135 {offsets = [0, 96], sizes = [8, 32], strides = [1, 1]} : vector<8x128xf32> to vector<8x32xf32>
    %cst_55 = arith.constant 5.000000e-01 : f32
    %148 = vector.broadcast %cst_55 : f32 to vector<8x32xf32>
    %149 = arith.mulf %148, %147 : vector<8x32xf32>
    %cst_56 = arith.constant 5.000000e-01 : f32
    %150 = vector.broadcast %cst_56 : f32 to vector<8x32xf32>
    %151 = arith.addf %149, %150 : vector<8x32xf32>
    %152 = arith.mulf %145, %129 : vector<8x32xf32>
    %153 = arith.mulf %140, %146 : vector<8x32xf32>
    %154 = arith.addf %152, %153 : vector<8x32xf32>
    %155 = math.tanh %154 : vector<8x32xf32>
    %156 = arith.mulf %151, %155 : vector<8x32xf32>
    %157 = vector.extract_strided_slice %29 {offsets = [40, 0], sizes = [8, 128], strides = [1, 1]} : vector<64x128xf32> to vector<8x128xf32>
    %cst_57 = arith.constant dense<0.000000e+00> : vector<8x128xf32>
    %158 = tpu.matmul %156, %4, %cst_57 {dimension_numbers = #tpu.dot_dimension_numbers<[1], [0], [0], [1], [0, 0, 1, 1], [], []>} : vector<8x32xf32>, vector<32x128xf32>, vector<8x128xf32> -> vector<8x128xf32>
    %159 = arith.addf %157, %158 : vector<8x128xf32>
    %160 = math.tanh %159 : vector<8x128xf32>
    %161 = vector.extract_strided_slice %160 {offsets = [0, 0], sizes = [8, 32], strides = [1, 1]} : vector<8x128xf32> to vector<8x32xf32>
    %cst_58 = arith.constant 5.000000e-01 : f32
    %162 = vector.broadcast %cst_58 : f32 to vector<8x32xf32>
    %163 = arith.mulf %162, %161 : vector<8x32xf32>
    %cst_59 = arith.constant 5.000000e-01 : f32
    %164 = vector.broadcast %cst_59 : f32 to vector<8x32xf32>
    %165 = arith.addf %163, %164 : vector<8x32xf32>
    %166 = vector.extract_strided_slice %160 {offsets = [0, 32], sizes = [8, 32], strides = [1, 1]} : vector<8x128xf32> to vector<8x32xf32>
    %cst_60 = arith.constant 5.000000e-01 : f32
    %167 = vector.broadcast %cst_60 : f32 to vector<8x32xf32>
    %168 = arith.mulf %167, %166 : vector<8x32xf32>
    %cst_61 = arith.constant 5.000000e-01 : f32
    %169 = vector.broadcast %cst_61 : f32 to vector<8x32xf32>
    %170 = arith.addf %168, %169 : vector<8x32xf32>
    %171 = vector.extract_strided_slice %160 {offsets = [0, 64], sizes = [8, 32], strides = [1, 1]} : vector<8x128xf32> to vector<8x32xf32>
    %172 = vector.extract_strided_slice %160 {offsets = [0, 96], sizes = [8, 32], strides = [1, 1]} : vector<8x128xf32> to vector<8x32xf32>
    %cst_62 = arith.constant 5.000000e-01 : f32
    %173 = vector.broadcast %cst_62 : f32 to vector<8x32xf32>
    %174 = arith.mulf %173, %172 : vector<8x32xf32>
    %cst_63 = arith.constant 5.000000e-01 : f32
    %175 = vector.broadcast %cst_63 : f32 to vector<8x32xf32>
    %176 = arith.addf %174, %175 : vector<8x32xf32>
    %177 = arith.mulf %170, %154 : vector<8x32xf32>
    %178 = arith.mulf %165, %171 : vector<8x32xf32>
    %179 = arith.addf %177, %178 : vector<8x32xf32>
    %180 = math.tanh %179 : vector<8x32xf32>
    %181 = arith.mulf %176, %180 : vector<8x32xf32>
    %182 = vector.extract_strided_slice %29 {offsets = [48, 0], sizes = [8, 128], strides = [1, 1]} : vector<64x128xf32> to vector<8x128xf32>
    %cst_64 = arith.constant dense<0.000000e+00> : vector<8x128xf32>
    %183 = tpu.matmul %181, %4, %cst_64 {dimension_numbers = #tpu.dot_dimension_numbers<[1], [0], [0], [1], [0, 0, 1, 1], [], []>} : vector<8x32xf32>, vector<32x128xf32>, vector<8x128xf32> -> vector<8x128xf32>
    %184 = arith.addf %182, %183 : vector<8x128xf32>
    %185 = math.tanh %184 : vector<8x128xf32>
    %186 = vector.extract_strided_slice %185 {offsets = [0, 0], sizes = [8, 32], strides = [1, 1]} : vector<8x128xf32> to vector<8x32xf32>
    %cst_65 = arith.constant 5.000000e-01 : f32
    %187 = vector.broadcast %cst_65 : f32 to vector<8x32xf32>
    %188 = arith.mulf %187, %186 : vector<8x32xf32>
    %cst_66 = arith.constant 5.000000e-01 : f32
    %189 = vector.broadcast %cst_66 : f32 to vector<8x32xf32>
    %190 = arith.addf %188, %189 : vector<8x32xf32>
    %191 = vector.extract_strided_slice %185 {offsets = [0, 32], sizes = [8, 32], strides = [1, 1]} : vector<8x128xf32> to vector<8x32xf32>
    %cst_67 = arith.constant 5.000000e-01 : f32
    %192 = vector.broadcast %cst_67 : f32 to vector<8x32xf32>
    %193 = arith.mulf %192, %191 : vector<8x32xf32>
    %cst_68 = arith.constant 5.000000e-01 : f32
    %194 = vector.broadcast %cst_68 : f32 to vector<8x32xf32>
    %195 = arith.addf %193, %194 : vector<8x32xf32>
    %196 = vector.extract_strided_slice %185 {offsets = [0, 64], sizes = [8, 32], strides = [1, 1]} : vector<8x128xf32> to vector<8x32xf32>
    %197 = vector.extract_strided_slice %185 {offsets = [0, 96], sizes = [8, 32], strides = [1, 1]} : vector<8x128xf32> to vector<8x32xf32>
    %cst_69 = arith.constant 5.000000e-01 : f32
    %198 = vector.broadcast %cst_69 : f32 to vector<8x32xf32>
    %199 = arith.mulf %198, %197 : vector<8x32xf32>
    %cst_70 = arith.constant 5.000000e-01 : f32
    %200 = vector.broadcast %cst_70 : f32 to vector<8x32xf32>
    %201 = arith.addf %199, %200 : vector<8x32xf32>
    %202 = arith.mulf %195, %179 : vector<8x32xf32>
    %203 = arith.mulf %190, %196 : vector<8x32xf32>
    %204 = arith.addf %202, %203 : vector<8x32xf32>
    %205 = math.tanh %204 : vector<8x32xf32>
    %206 = arith.mulf %201, %205 : vector<8x32xf32>
    %207 = vector.extract_strided_slice %29 {offsets = [56, 0], sizes = [8, 128], strides = [1, 1]} : vector<64x128xf32> to vector<8x128xf32>
    %cst_71 = arith.constant dense<0.000000e+00> : vector<8x128xf32>
    %208 = tpu.matmul %206, %4, %cst_71 {dimension_numbers = #tpu.dot_dimension_numbers<[1], [0], [0], [1], [0, 0, 1, 1], [], []>} : vector<8x32xf32>, vector<32x128xf32>, vector<8x128xf32> -> vector<8x128xf32>
    %209 = arith.addf %207, %208 : vector<8x128xf32>
    %210 = math.tanh %209 : vector<8x128xf32>
    %211 = vector.extract_strided_slice %210 {offsets = [0, 0], sizes = [8, 32], strides = [1, 1]} : vector<8x128xf32> to vector<8x32xf32>
    %cst_72 = arith.constant 5.000000e-01 : f32
    %212 = vector.broadcast %cst_72 : f32 to vector<8x32xf32>
    %213 = arith.mulf %212, %211 : vector<8x32xf32>
    %cst_73 = arith.constant 5.000000e-01 : f32
    %214 = vector.broadcast %cst_73 : f32 to vector<8x32xf32>
    %215 = arith.addf %213, %214 : vector<8x32xf32>
    %216 = vector.extract_strided_slice %210 {offsets = [0, 32], sizes = [8, 32], strides = [1, 1]} : vector<8x128xf32> to vector<8x32xf32>
    %cst_74 = arith.constant 5.000000e-01 : f32
    %217 = vector.broadcast %cst_74 : f32 to vector<8x32xf32>
    %218 = arith.mulf %217, %216 : vector<8x32xf32>
    %cst_75 = arith.constant 5.000000e-01 : f32
    %219 = vector.broadcast %cst_75 : f32 to vector<8x32xf32>
    %220 = arith.addf %218, %219 : vector<8x32xf32>
    %221 = vector.extract_strided_slice %210 {offsets = [0, 64], sizes = [8, 32], strides = [1, 1]} : vector<8x128xf32> to vector<8x32xf32>
    %222 = vector.extract_strided_slice %210 {offsets = [0, 96], sizes = [8, 32], strides = [1, 1]} : vector<8x128xf32> to vector<8x32xf32>
    %cst_76 = arith.constant 5.000000e-01 : f32
    %223 = vector.broadcast %cst_76 : f32 to vector<8x32xf32>
    %224 = arith.mulf %223, %222 : vector<8x32xf32>
    %cst_77 = arith.constant 5.000000e-01 : f32
    %225 = vector.broadcast %cst_77 : f32 to vector<8x32xf32>
    %226 = arith.addf %224, %225 : vector<8x32xf32>
    %227 = arith.mulf %220, %204 : vector<8x32xf32>
    %228 = arith.mulf %215, %221 : vector<8x32xf32>
    %229 = arith.addf %227, %228 : vector<8x32xf32>
    %230 = math.tanh %229 : vector<8x32xf32>
    %231 = arith.mulf %226, %230 : vector<8x32xf32>
    %cst_78 = arith.constant dense<0.000000e+00> : vector<8x128xf32>
    %232 = tpu.matmul %231, %5, %cst_78 {dimension_numbers = #tpu.dot_dimension_numbers<[1], [0], [0], [1], [0, 0, 1, 1], [], []>} : vector<8x32xf32>, vector<32x128xf32>, vector<8x128xf32> -> vector<8x128xf32>
    %233 = vector.broadcast %10 : vector<1x128xf32> to vector<8x128xf32>
    %234 = arith.addf %232, %233 : vector<8x128xf32>
    %235 = vector.extract_strided_slice %234 {offsets = [0, 0], sizes = [8, 5], strides = [1, 1]} : vector<8x128xf32> to vector<8x5xf32>
    %236 = vector.extract_strided_slice %234 {offsets = [0, 5], sizes = [8, 1], strides = [1, 1]} : vector<8x128xf32> to vector<8x1xf32>
    %237 = vector.broadcast %236 : vector<8x1xf32> to vector<8x5xf32>
    %238 = arith.addf %237, %235 : vector<8x5xf32>
    %cst_79 = arith.constant dense<0.000000e+00> : vector<8xf32>
    %239 = vector.multi_reduction <add>, %235, %cst_79 [1] : vector<8x5xf32> to vector<8xf32>
    %240 = vector.shape_cast %239 : vector<8xf32> to vector<8x1xf32>
    %cst_80 = arith.constant 5.000000e+00 : f32
    %241 = vector.broadcast %cst_80 : f32 to vector<8x1xf32>
    %242 = arith.divf %240, %241 : vector<8x1xf32>
    %243 = vector.broadcast %242 : vector<8x1xf32> to vector<8x5xf32>
    %244 = arith.subf %238, %243 : vector<8x5xf32>
    %cst_81 = arith.constant 0.000000e+00 : f32
    %245 = vector.broadcast %cst_81 : f32 to vector<8x27xf32>
    %cst_82 = arith.constant 0.000000e+00 : f32
    %246 = vector.broadcast %cst_82 : f32 to vector<8x32xf32>
    %247 = tpu.concatenate %244, %245, %231, %229, %246 in 1 : vector<8x5xf32>, vector<8x27xf32>, vector<8x32xf32>, vector<8x32xf32>, vector<8x32xf32> -> vector<8x128xf32>
    %c0_83 = arith.constant 0 : index
    %c0_84 = arith.constant 0 : index
    %248 = vector.load %arg3[%c0_83, %c0_84] : memref<8x128xf32, #tpu.memory_space<vmem>>, vector<8x128xf32>
    tpu.vector_store %arg3[%c0_83, %c0_84], %247 {strides = array<i32>} : memref<8x128xf32, #tpu.memory_space<vmem>>, vector<8x128xf32>,
    return
  }
}

</mosaic_0001>

<llo_original>
// kernel: tpu_custom_call.1
$region0: #{tpu_custom_call.1}
  #allocation0 [shape = 'u32[]', space=smem, size = 0x4, offset = 0x4, fixed_abs, tag = 'smem constant byte address 0x4 - core index']
  #allocation1 [shape = 'u32[144,128]{1,0:T(1,128)}', space=vmem, size = 0x12000, scoped, tag = 'internal scratch']
  %s0 = inlined_call_operand.vmem [shape: f32[64,24], index: 0, kind: input, shape index: {}]
  %s1 = inlined_call_operand.vmem [shape: f32[8,64], index: 1, kind: input, shape index: {}]
  %s2 = inlined_call_operand.hbm [shape: f32[480,128], index: 2, kind: input, shape index: {}]
  %s3 = inlined_call_operand.hbm [shape: f32[8,128], index: 3, kind: output, shape index: {}]
  %s4 = sld [smem:[#allocation0]]
  $region26: #{tpu_custom_call.1} parent=0
    _
  %s6 = ssub.s32 1, %s4
  %s7 = scalar_select 0, %s6, %s4
  $region1: #{tpu_custom_call.1} parent=0
    #allocation2 [shape = 'u8[245760]{0}', space=vmem, size = 0x3c000, scoped, tag = 'input window, operand 2, single buffered']
    #allocation3 [shape = 's32[1]{0}', space=sflag, size = 0x4, scoped, tag = 'scoped memory for tpu_custom_call.1']
    #allocation4 [shape = 's32[1]{0}', space=sflag, size = 0x4, scoped, tag = 'scoped memory for tpu_custom_call.1']
    #allocation5 [shape = 'u8[4096]{0}', space=vmem, size = 0x1000, scoped, tag = 'output window, operand 0, single buffered']
    %8 = vsyncpa [#allocation3], 0
    %9 = vsyncpa [#allocation4], 0
    // Predicated region
    $region2: #{tpu_custom_call.1} parent=1 // pred_check
      _
    $region3: #{tpu_custom_call.1} parent=1 // pred_check_branch
      %11 = sbr.rel (0) target = $region5
    $region4: #{tpu_custom_call.1} parent=1 // pred_region
      _
    $region5: #{tpu_custom_call.1} parent=1 // pred_fallthru
      _
    // Predicated region
    $region6: #{tpu_custom_call.1} parent=1 // pred_check
      _
    $region7: #{tpu_custom_call.1} parent=1 // pred_check_branch
      %13 = sbr.rel (0) target = $region9
    $region8: #{tpu_custom_call.1} parent=1 // pred_region
      _
    $region9: #{tpu_custom_call.1} parent=1 // pred_fallthru
      _
    // Predicated region
    $region10: #{tpu_custom_call.1} parent=1 // pred_check
      _
    $region11: #{tpu_custom_call.1} parent=1 // pred_check_branch
      %15 = sbr.rel (0) target = $region13
    $region12: #{tpu_custom_call.1} parent=1 // pred_region
      %s17 = ssub.s32 7680, 7680
      %18 = vsyncadd [#allocation3], %s17
      %s19 = sshll.u32 [#allocation2], 4
      %s20 = int_to_ptr.vmem [resolvable:$true] %s19
      %25 = dma.hbm_to_vmem [thread:$0]  %s2, 7680, %s20, [#allocation3], 128, 128, 8
    $region13: #{tpu_custom_call.1} parent=1 // pred_fallthru
      _
    // Predicated region
    $region14: #{tpu_custom_call.1} parent=1 // pred_check
      _
    $region15: #{tpu_custom_call.1} parent=1 // pred_check_branch
      %27 = sbr.rel (0) target = $region17
    $region16: #{tpu_custom_call.1} parent=1 // pred_region
      %28 = dma.done [#allocation3], 7680
    $region17: #{tpu_custom_call.1} parent=1 // pred_fallthru
      _
    %v29 = vld [vmem:[#allocation2] sm:$0xff]
    %v30 = vld [vmem:[#allocation2 + $0x8] sm:$0xff]
    %v31 = vld [vmem:[#allocation2 + $0x10] sm:$0xff]
    %v32 = vld [vmem:[#allocation2 + $0x18] sm:$0xff]
    %v33 = vld [vmem:[#allocation2 + $0x20] sm:$0xff]
    %v34 = vld [vmem:[#allocation2 + $0x28] sm:$0xff]
    %v35 = vld [vmem:[#allocation2 + $0x30] sm:$0xff]
    %v36 = vld [vmem:[#allocation2 + $0x38] sm:$0xff]
    %v37 = vld [vmem:[#allocation2 + $0x40] sm:$0xff]
    %v38 = vld [vmem:[#allocation2 + $0x48] sm:$0xff]
    %v39 = vld [vmem:[#allocation2 + $0x50] sm:$0xff]
    %v40 = vld [vmem:[#allocation2 + $0x58] sm:$0xff]
    %v41 = vld [vmem:[#allocation2 + $0x60] sm:$0xff]
    %v42 = vld [vmem:[#allocation2 + $0x68] sm:$0xff]
    %v43 = vld [vmem:[#allocation2 + $0x70] sm:$0xff]
    %v44 = vld [vmem:[#allocation2 + $0x78] sm:$0xff]
    %v45 = vld [vmem:[#allocation2 + $0x80] sm:$0xff]
    %v46 = vld [vmem:[#allocation2 + $0x88] sm:$0xff]
    %v47 = vld [vmem:[#allocation2 + $0x90] sm:$0xff]
    %v48 = vld [vmem:[#allocation2 + $0x98] sm:$0xff]
    %v49 = vld [vmem:[#allocation2 + $0xa0] sm:$0xff]
    %v50 = vld [vmem:[#allocation2 + $0xa8] sm:$0xff]
    %v51 = vld [vmem:[#allocation2 + $0xb0] sm:$0xff]
    %v52 = vld [vmem:[#allocation2 + $0xb8] sm:$0xff]
    %v53 = vld [vmem:[#allocation2 + $0xc0] sm:$0xff]
    %v54 = vld [vmem:[#allocation2 + $0xc8] sm:$0xff]
    %v55 = vld [vmem:[#allocation2 + $0xd0] sm:$0xff]
    %v56 = vld [vmem:[#allocation2 + $0xd8] sm:$0xff]
    %v57 = vld [vmem:[#allocation2 + $0xe0] sm:$0xff]
    %v58 = vld [vmem:[#allocation2 + $0xe8] sm:$0xff]
    %v59 = vld [vmem:[#allocation2 + $0xf0] sm:$0xff]
    %v60 = vld [vmem:[#allocation2 + $0xf8] sm:$0xff]
    %v61 = vld [vmem:[#allocation2 + $0x100] sm:$0xff]
    %v62 = vld [vmem:[#allocation2 + $0x108] sm:$0xff]
    %v63 = vld [vmem:[#allocation2 + $0x110] sm:$0xff]
    %v64 = vld [vmem:[#allocation2 + $0x118] sm:$0xff]
    %v65 = vld [vmem:[#allocation2 + $0x120] sm:$0xff]
    %v66 = vld [vmem:[#allocation2 + $0x128] sm:$0xff]
    %v67 = vld [vmem:[#allocation2 + $0x130] sm:$0xff]
    %v68 = vld [vmem:[#allocation2 + $0x138] sm:$0xff]
    %v69 = vld [vmem:[#allocation2 + $0x140] sm:$0xff]
    %v70 = vld [vmem:[#allocation2 + $0x148] sm:$0xff]
    %v71 = vld [vmem:[#allocation2 + $0x150] sm:$0xff]
    %v72 = vld [vmem:[#allocation2 + $0x158] sm:$0xff]
    %v73 = vld [vmem:[#allocation2 + $0x160] sm:$0xff]
    %v74 = vld [vmem:[#allocation2 + $0x168] sm:$0xff]
    %v75 = vld [vmem:[#allocation2 + $0x170] sm:$0xff]
    %v76 = vld [vmem:[#allocation2 + $0x178] sm:$0xff]
    %v77 = vld [vmem:[#allocation2 + $0x180] sm:$0xff]
    %v78 = vld [vmem:[#allocation2 + $0x188] sm:$0xff]
    %v79 = vld [vmem:[#allocation2 + $0x190] sm:$0xff]
    %v80 = vld [vmem:[#allocation2 + $0x198] sm:$0xff]
    %v81 = vld [vmem:[#allocation2 + $0x1a0] sm:$0xff]
    %v82 = vld [vmem:[#allocation2 + $0x1a8] sm:$0xff]
    %v83 = vld [vmem:[#allocation2 + $0x1b0] sm:$0xff]
    %v84 = vld [vmem:[#allocation2 + $0x1b8] sm:$0xff]
    %v85 = vld [vmem:[#allocation2 + $0x1c0] sm:$0xff]
    %v86 = vld [vmem:[#allocation2 + $0x1c8] sm:$0xff]
    %v87 = vld [vmem:[#allocation2 + $0x1d0] sm:$0xff]
    %v88 = vld [vmem:[#allocation2 + $0x1d8] sm:$0x1]
    %v89 = vld [vmem:[#allocation2 + $0x1d9] sm:$0x1]
    %v90 = vld [vmem:[#allocation2 + $0x1da] sm:$0x1]
    %v91 = vld [vmem:[#allocation2 + $0x1db] sm:$0x1]
    %v92 = vld [vmem:[#allocation2 + $0x1dc] sm:$0x1]
    %v93 = vld [vmem:[%s0] sm:$0xff]
    %v94 = vld [vmem:[%s0 + $0x8] sm:$0xff]
    %v95 = vld [vmem:[%s0 + $0x10] sm:$0xff]
    %v96 = vld [vmem:[%s0 + $0x18] sm:$0xff]
    %v97 = vld [vmem:[%s0 + $0x20] sm:$0xff]
    %v98 = vld [vmem:[%s0 + $0x28] sm:$0xff]
    %v99 = vld [vmem:[%s0 + $0x30] sm:$0xff]
    %v100 = vld [vmem:[%s0 + $0x38] sm:$0xff]
    %v101 = vlaneseq
    %v102 = vshrl.u32 %v101, 7
    %v103 = vsub.s32 0, %v102
    %v104 = vrot.slane %v88, %v103
    %vm105 = vcmask 195584
    %v107 = vsel %vm105, %v93, 0
    %v110 = vsel %vm105, %v94, 0
    %v113 = vsel %vm105, %v95, 0
    %v116 = vsel %vm105, %v96, 0
    %v119 = vsel %vm105, %v97, 0
    %v122 = vsel %vm105, %v98, 0
    %v125 = vsel %vm105, %v99, 0
    %v128 = vsel %vm105, %v100, 0
    %130 = vmatprep.subr.mxu0 0.0
    %131 = vmatpush1.msra.mxu0 0.0
    %132 = vmatprep.subr.mxu0 0.0
    %133 = vmatpush1.msra.mxu0 0.0
    %134 = vmatprep.subr.mxu0 0.0
    %135 = vmatpush1.msra.mxu0 0.0
    %136 = vmatprep.subr.mxu0 0.0
    %137 = vmatpush1.msra.mxu0 0.0
    %138 = vmatprep.subr.mxu0 0.0
    %139 = vmatpush1.msra.mxu0 0.0
    %140 = vmatprep.subr.mxu0 0.0
    %141 = vmatpush1.msra.mxu0 0.0
    %142 = vmatprep.subr.mxu0 0.0
    %143 = vmatpush1.msra.mxu0 0.0
    %144 = vmatprep.subr.mxu0 0.0
    %145 = vmatpush1.msra.mxu0 0.0
    %146 = vmatprep.subr.mxu0 0.0
    %147 = vmatpush1.msra.mxu0 0.0
    %148 = vmatprep.subr.mxu0 0.0
    %149 = vmatpush1.msra.mxu0 0.0
    %150 = vmatprep.subr.mxu0 0.0
    %151 = vmatpush1.msra.mxu0 0.0
    %152 = vmatprep.subr.mxu0 0.0
    %153 = vmatpush1.msra.mxu0 0.0
    %154 = vmatprep.subr.mxu0 0.0
    %155 = vmatpush1.msra.mxu0 0.0
    %156 = vmatprep.subr.mxu0 0.0
    %157 = vmatpush1.msra.mxu0 %v31
    %158 = vmatprep.subr.mxu0 0.0
    %159 = vmatpush1.msra.mxu0 %v30
    %160 = vmatprep.subr.mxu0 0.0
    %161 = vmatpush1.msra.mxu0 %v29
    %162 = vmatprep.subr.mxu0 0.0
    %163 = vmatpush2.msra.mxu0 0.0
    %164 = vmatprep.subr.mxu0 0.0
    %165 = vmatpush2.msra.mxu0 0.0
    %166 = vmatprep.subr.mxu0 0.0
    %167 = vmatpush2.msra.mxu0 0.0
    %168 = vmatprep.subr.mxu0 0.0
    %169 = vmatpush2.msra.mxu0 0.0
    %170 = vmatprep.subr.mxu0 0.0
    %171 = vmatpush2.msra.mxu0 0.0
    %172 = vmatprep.subr.mxu0 0.0
    %173 = vmatpush2.msra.mxu0 0.0
    %174 = vmatprep.subr.mxu0 0.0
    %175 = vmatpush2.msra.mxu0 0.0
    %176 = vmatprep.subr.mxu0 0.0
    %177 = vmatpush2.msra.mxu0 0.0
    %178 = vmatprep.subr.mxu0 0.0
    %179 = vmatpush2.msra.mxu0 0.0
    %180 = vmatprep.subr.mxu0 0.0
    %181 = vmatpush2.msra.mxu0 0.0
    %182 = vmatprep.subr.mxu0 0.0
    %183 = vmatpush2.msra.mxu0 0.0
    %184 = vmatprep.subr.mxu0 0.0
    %185 = vmatpush2.msra.mxu0 0.0
    %186 = vmatprep.subr.mxu0 0.0
    %187 = vmatpush2.msra.mxu0 0.0
    %188 = vmatprep.subr.mxu0 0.0
    %189 = vmatpush2.msra.mxu0 0.0
    %190 = vmatprep.subr.mxu0 0.0
    %191 = vmatpush2.msra.mxu0 0.0
    %192 = vmatprep.subr.mxu0 0.0
    %193 = vmatpush2.msra.mxu0 0.0
    %194 = vmatprep.mubr.f32.mxu0 0.0
    %195 = vmatmul.mubr.f32.gmra.mxu0 %v107
    %v196 = vpop.f32.mrf.mxu0
    %v197 = vadd.f32 %v104, %v196
    %v198 = vpop.f32.mrf.mxu0
    %199 = vmatprep.mubr.f32.mxu0 0.0
    %200 = vmatmul.mubr.f32.gmra.mxu0 %v110
    %v201 = vpop.f32.mrf.mxu0
    %v202 = vadd.f32 %v104, %v201
    %v203 = vpop.f32.mrf.mxu0
    %204 = vmatprep.mubr.f32.mxu0 0.0
    %205 = vmatmul.mubr.f32.gmra.mxu0 %v113
    %v206 = vpop.f32.mrf.mxu0
    %v207 = vadd.f32 %v104, %v206
    %v208 = vpop.f32.mrf.mxu0
    %209 = vmatprep.mubr.f32.mxu0 0.0
    %210 = vmatmul.mubr.f32.gmra.mxu0 %v116
    %v211 = vpop.f32.mrf.mxu0
    %v212 = vadd.f32 %v104, %v211
    %v213 = vpop.f32.mrf.mxu0
    %214 = vmatprep.mubr.f32.mxu0 0.0
    %215 = vmatmul.mubr.f32.gmra.mxu0 %v119
    %v216 = vpop.f32.mrf.mxu0
    %v217 = vadd.f32 %v104, %v216
    %v218 = vpop.f32.mrf.mxu0
    %219 = vmatprep.mubr.f32.mxu0 0.0
    %220 = vmatmul.mubr.f32.gmra.mxu0 %v122
    %v221 = vpop.f32.mrf.mxu0
    %v222 = vadd.f32 %v104, %v221
    %v223 = vpop.f32.mrf.mxu0
    %224 = vmatprep.mubr.f32.mxu0 0.0
    %225 = vmatmul.mubr.f32.gmra.mxu0 %v125
    %v226 = vpop.f32.mrf.mxu0
    %v227 = vadd.f32 %v104, %v226
    %v228 = vpop.f32.mrf.mxu0
    %229 = vmatprep.mubr.f32.mxu0 0.0
    %230 = vmatmul.mubr.f32.gmra.mxu0 %v128
    %v231 = vpop.f32.mrf.mxu0
    %v232 = vadd.f32 %v104, %v231
    %v233 = vpop.f32.mrf.mxu0
    %234 = vdwg.mxu0
    %v235 = vmax.f32 %v197, 0.0
    %v236 = vmax.f32 %v202, 0.0
    %v237 = vmax.f32 %v207, 0.0
    %v238 = vmax.f32 %v212, 0.0
    %v239 = vmax.f32 %v217, 0.0
    %v240 = vmax.f32 %v222, 0.0
    %v241 = vmax.f32 %v227, 0.0
    %v242 = vmax.f32 %v232, 0.0
    %v243 = vlaneseq
    %v244 = vshrl.u32 %v243, 7
    %v245 = vsub.s32 0, %v244
    %v246 = vrot.slane %v89, %v245
    %247 = vmatprep.subr.mxu0 0.0
    %248 = vmatpush1.msra.mxu0 %v47
    %249 = vmatprep.subr.mxu0 0.0
    %250 = vmatpush1.msra.mxu0 %v46
    %251 = vmatprep.subr.mxu0 0.0
    %252 = vmatpush1.msra.mxu0 %v45
    %253 = vmatprep.subr.mxu0 0.0
    %254 = vmatpush1.msra.mxu0 %v44
    %255 = vmatprep.subr.mxu0 0.0
    %256 = vmatpush1.msra.mxu0 %v43
    %257 = vmatprep.subr.mxu0 0.0
    %258 = vmatpush1.msra.mxu0 %v42
    %259 = vmatprep.subr.mxu0 0.0
    %260 = vmatpush1.msra.mxu0 %v41
    %261 = vmatprep.subr.mxu0 0.0
    %262 = vmatpush1.msra.mxu0 %v40
    %263 = vmatprep.subr.mxu0 0.0
    %264 = vmatpush1.msra.mxu0 %v39
    %265 = vmatprep.subr.mxu0 0.0
    %266 = vmatpush1.msra.mxu0 %v38
    %267 = vmatprep.subr.mxu0 0.0
    %268 = vmatpush1.msra.mxu0 %v37
    %269 = vmatprep.subr.mxu0 0.0
    %270 = vmatpush1.msra.mxu0 %v36
    %271 = vmatprep.subr.mxu0 0.0
    %272 = vmatpush1.msra.mxu0 %v35
    %273 = vmatprep.subr.mxu0 0.0
    %274 = vmatpush1.msra.mxu0 %v34
    %275 = vmatprep.subr.mxu0 0.0
    %276 = vmatpush1.msra.mxu0 %v33
    %277 = vmatprep.subr.mxu0 0.0
    %278 = vmatpush1.msra.mxu0 %v32
    %279 = vmatprep.subr.mxu0 0.0
    %280 = vmatpush2.msra.mxu0 0.0
    %281 = vmatprep.subr.mxu0 0.0
    %282 = vmatpush2.msra.mxu0 0.0
    %283 = vmatprep.subr.mxu0 0.0
    %284 = vmatpush2.msra.mxu0 0.0
    %285 = vmatprep.subr.mxu0 0.0
    %286 = vmatpush2.msra.mxu0 0.0
    %287 = vmatprep.subr.mxu0 0.0
    %288 = vmatpush2.msra.mxu0 0.0
    %289 = vmatprep.subr.mxu0 0.0
    %290 = vmatpush2.msra.mxu0 0.0
    %291 = vmatprep.subr.mxu0 0.0
    %292 = vmatpush2.msra.mxu0 0.0
    %293 = vmatprep.subr.mxu0 0.0
    %294 = vmatpush2.msra.mxu0 0.0
    %295 = vmatprep.subr.mxu0 0.0
    %296 = vmatpush2.msra.mxu0 0.0
    %297 = vmatprep.subr.mxu0 0.0
    %298 = vmatpush2.msra.mxu0 0.0
    %299 = vmatprep.subr.mxu0 0.0
    %300 = vmatpush2.msra.mxu0 0.0
    %301 = vmatprep.subr.mxu0 0.0
    %302 = vmatpush2.msra.mxu0 0.0
    %303 = vmatprep.subr.mxu0 0.0
    %304 = vmatpush2.msra.mxu0 0.0
    %305 = vmatprep.subr.mxu0 0.0
    %306 = vmatpush2.msra.mxu0 0.0
    %307 = vmatprep.subr.mxu0 0.0
    %308 = vmatpush2.msra.mxu0 0.0
    %309 = vmatprep.subr.mxu0 0.0
    %310 = vmatpush2.msra.mxu0 0.0
    %311 = vmatprep.mubr.f32.mxu0 0.0
    %312 = vmatmul.mubr.f32.gmra.mxu0 %v235
    %v313 = vpop.f32.mrf.mxu0
    %v314 = vadd.f32 %v246, %v313
    %v315 = vpop.f32.mrf.mxu0
    %316 = vmatprep.mubr.f32.mxu0 0.0
    %317 = vmatmul.mubr.f32.gmra.mxu0 %v236
    %v318 = vpop.f32.mrf.mxu0
    %v319 = vadd.f32 %v246, %v318
    %v320 = vpop.f32.mrf.mxu0
    %321 = vmatprep.mubr.f32.mxu0 0.0
    %322 = vmatmul.mubr.f32.gmra.mxu0 %v237
    %v323 = vpop.f32.mrf.mxu0
    %v324 = vadd.f32 %v246, %v323
    %v325 = vpop.f32.mrf.mxu0
    %326 = vmatprep.mubr.f32.mxu0 0.0
    %327 = vmatmul.mubr.f32.gmra.mxu0 %v238
    %v328 = vpop.f32.mrf.mxu0
    %v329 = vadd.f32 %v246, %v328
    %v330 = vpop.f32.mrf.mxu0
    %331 = vmatprep.mubr.f32.mxu0 0.0
    %332 = vmatmul.mubr.f32.gmra.mxu0 %v239
    %v333 = vpop.f32.mrf.mxu0
    %v334 = vadd.f32 %v246, %v333
    %v335 = vpop.f32.mrf.mxu0
    %336 = vmatprep.mubr.f32.mxu0 0.0
    %337 = vmatmul.mubr.f32.gmra.mxu0 %v240
    %v338 = vpop.f32.mrf.mxu0
    %v339 = vadd.f32 %v246, %v338
    %v340 = vpop.f32.mrf.mxu0
    %341 = vmatprep.mubr.f32.mxu0 0.0
    %342 = vmatmul.mubr.f32.gmra.mxu0 %v241
    %v343 = vpop.f32.mrf.mxu0
    %v344 = vadd.f32 %v246, %v343
    %v345 = vpop.f32.mrf.mxu0
    %346 = vmatprep.mubr.f32.mxu0 0.0
    %347 = vmatmul.mubr.f32.gmra.mxu0 %v242
    %v348 = vpop.f32.mrf.mxu0
    %v349 = vadd.f32 %v246, %v348
    %v350 = vpop.f32.mrf.mxu0
    %351 = vdwg.mxu0
    %v352 = vmax.f32 %v314, 0.0
    %v353 = vmax.f32 %v319, 0.0
    %v354 = vmax.f32 %v324, 0.0
    %v355 = vmax.f32 %v329, 0.0
    %v356 = vmax.f32 %v334, 0.0
    %v357 = vmax.f32 %v339, 0.0
    %v358 = vmax.f32 %v344, 0.0
    %v359 = vmax.f32 %v349, 0.0
    %v360 = vlaneseq
    %v361 = vshrl.u32 %v360, 7
    %v362 = vsub.s32 0, %v361
    %v363 = vrot.slane %v90, %v362
    %364 = vmatprep.subr.mxu0 0.0
    %365 = vmatpush1.msra.mxu0 %v63
    %366 = vmatprep.subr.mxu0 0.0
    %367 = vmatpush1.msra.mxu0 %v62
    %368 = vmatprep.subr.mxu0 0.0
    %369 = vmatpush1.msra.mxu0 %v61
    %370 = vmatprep.subr.mxu0 0.0
    %371 = vmatpush1.msra.mxu0 %v60
    %372 = vmatprep.subr.mxu0 0.0
    %373 = vmatpush1.msra.mxu0 %v59
    %374 = vmatprep.subr.mxu0 0.0
    %375 = vmatpush1.msra.mxu0 %v58
    %376 = vmatprep.subr.mxu0 0.0
    %377 = vmatpush1.msra.mxu0 %v57
    %378 = vmatprep.subr.mxu0 0.0
    %379 = vmatpush1.msra.mxu0 %v56
    %380 = vmatprep.subr.mxu0 0.0
    %381 = vmatpush1.msra.mxu0 %v55
    %382 = vmatprep.subr.mxu0 0.0
    %383 = vmatpush1.msra.mxu0 %v54
    %384 = vmatprep.subr.mxu0 0.0
    %385 = vmatpush1.msra.mxu0 %v53
    %386 = vmatprep.subr.mxu0 0.0
    %387 = vmatpush1.msra.mxu0 %v52
    %388 = vmatprep.subr.mxu0 0.0
    %389 = vmatpush1.msra.mxu0 %v51
    %390 = vmatprep.subr.mxu0 0.0
    %391 = vmatpush1.msra.mxu0 %v50
    %392 = vmatprep.subr.mxu0 0.0
    %393 = vmatpush1.msra.mxu0 %v49
    %394 = vmatprep.subr.mxu0 0.0
    %395 = vmatpush1.msra.mxu0 %v48
    %396 = vmatprep.subr.mxu0 0.0
    %397 = vmatpush2.msra.mxu0 0.0
    %398 = vmatprep.subr.mxu0 0.0
    %399 = vmatpush2.msra.mxu0 0.0
    %400 = vmatprep.subr.mxu0 0.0
    %401 = vmatpush2.msra.mxu0 0.0
    %402 = vmatprep.subr.mxu0 0.0
    %403 = vmatpush2.msra.mxu0 0.0
    %404 = vmatprep.subr.mxu0 0.0
    %405 = vmatpush2.msra.mxu0 0.0
    %406 = vmatprep.subr.mxu0 0.0
    %407 = vmatpush2.msra.mxu0 0.0
    %408 = vmatprep.subr.mxu0 0.0
    %409 = vmatpush2.msra.mxu0 0.0
    %410 = vmatprep.subr.mxu0 0.0
    %411 = vmatpush2.msra.mxu0 0.0
    %412 = vmatprep.subr.mxu0 0.0
    %413 = vmatpush2.msra.mxu0 0.0
    %414 = vmatprep.subr.mxu0 0.0
    %415 = vmatpush2.msra.mxu0 0.0
    %416 = vmatprep.subr.mxu0 0.0
    %417 = vmatpush2.msra.mxu0 0.0
    %418 = vmatprep.subr.mxu0 0.0
    %419 = vmatpush2.msra.mxu0 0.0
    %420 = vmatprep.subr.mxu0 0.0
    %421 = vmatpush2.msra.mxu0 0.0
    %422 = vmatprep.subr.mxu0 0.0
    %423 = vmatpush2.msra.mxu0 0.0
    %424 = vmatprep.subr.mxu0 0.0
    %425 = vmatpush2.msra.mxu0 0.0
    %426 = vmatprep.subr.mxu0 0.0
    %427 = vmatpush2.msra.mxu0 0.0
    %428 = vmatprep.mubr.f32.mxu0 0.0
    %429 = vmatmul.mubr.f32.gmra.mxu0 %v352
    %v430 = vpop.f32.mrf.mxu0
    %v431 = vadd.f32 %v363, %v430
    %v432 = vpop.f32.mrf.mxu0
    %433 = vmatprep.mubr.f32.mxu0 0.0
    %434 = vmatmul.mubr.f32.gmra.mxu0 %v353
    %v435 = vpop.f32.mrf.mxu0
    %v436 = vadd.f32 %v363, %v435
    %v437 = vpop.f32.mrf.mxu0
    %438 = vmatprep.mubr.f32.mxu0 0.0
    %439 = vmatmul.mubr.f32.gmra.mxu0 %v354
    %v440 = vpop.f32.mrf.mxu0
    %v441 = vadd.f32 %v363, %v440
    %v442 = vpop.f32.mrf.mxu0
    %443 = vmatprep.mubr.f32.mxu0 0.0
    %444 = vmatmul.mubr.f32.gmra.mxu0 %v355
    %v445 = vpop.f32.mrf.mxu0
    %v446 = vadd.f32 %v363, %v445
    %v447 = vpop.f32.mrf.mxu0
    %448 = vmatprep.mubr.f32.mxu0 0.0
    %449 = vmatmul.mubr.f32.gmra.mxu0 %v356
    %v450 = vpop.f32.mrf.mxu0
    %v451 = vadd.f32 %v363, %v450
    %v452 = vpop.f32.mrf.mxu0
    %453 = vmatprep.mubr.f32.mxu0 0.0
    %454 = vmatmul.mubr.f32.gmra.mxu0 %v357
    %v455 = vpop.f32.mrf.mxu0
    %v456 = vadd.f32 %v363, %v455
    %v457 = vpop.f32.mrf.mxu0
    %458 = vmatprep.mubr.f32.mxu0 0.0
    %459 = vmatmul.mubr.f32.gmra.mxu0 %v358
    %v460 = vpop.f32.mrf.mxu0
    %v461 = vadd.f32 %v363, %v460
    %v462 = vpop.f32.mrf.mxu0
    %463 = vmatprep.mubr.f32.mxu0 0.0
    %464 = vmatmul.mubr.f32.gmra.mxu0 %v359
    %v465 = vpop.f32.mrf.mxu0
    %v466 = vadd.f32 %v363, %v465
    %v467 = vpop.f32.mrf.mxu0
    %468 = vdwg.mxu0
    %v469 = vmax.f32 %v431, 0.0
    %v470 = vmax.f32 %v436, 0.0
    %v471 = vmax.f32 %v441, 0.0
    %v472 = vmax.f32 %v446, 0.0
    %v473 = vmax.f32 %v451, 0.0
    %v474 = vmax.f32 %v456, 0.0
    %v475 = vmax.f32 %v461, 0.0
    %v476 = vmax.f32 %v466, 0.0
    %v477 = vlaneseq
    %v478 = vshrl.u32 %v477, 7
    %v479 = vsub.s32 0, %v478
    %v480 = vrot.slane %v91, %v479
    %481 = vmatprep.subr.mxu0 0.0
    %482 = vmatpush1.msra.mxu0 %v79
    %483 = vmatprep.subr.mxu0 0.0
    %484 = vmatpush1.msra.mxu0 %v78
    %485 = vmatprep.subr.mxu0 0.0
    %486 = vmatpush1.msra.mxu0 %v77
    %487 = vmatprep.subr.mxu0 0.0
    %488 = vmatpush1.msra.mxu0 %v76
    %489 = vmatprep.subr.mxu0 0.0
    %490 = vmatpush1.msra.mxu0 %v75
    %491 = vmatprep.subr.mxu0 0.0
    %492 = vmatpush1.msra.mxu0 %v74
    %493 = vmatprep.subr.mxu0 0.0
    %494 = vmatpush1.msra.mxu0 %v73
    %495 = vmatprep.subr.mxu0 0.0
    %496 = vmatpush1.msra.mxu0 %v72
    %497 = vmatprep.subr.mxu0 0.0
    %498 = vmatpush1.msra.mxu0 %v71
    %499 = vmatprep.subr.mxu0 0.0
    %500 = vmatpush1.msra.mxu0 %v70
    %501 = vmatprep.subr.mxu0 0.0
    %502 = vmatpush1.msra.mxu0 %v69
    %503 = vmatprep.subr.mxu0 0.0
    %504 = vmatpush1.msra.mxu0 %v68
    %505 = vmatprep.subr.mxu0 0.0
    %506 = vmatpush1.msra.mxu0 %v67
    %507 = vmatprep.subr.mxu0 0.0
    %508 = vmatpush1.msra.mxu0 %v66
    %509 = vmatprep.subr.mxu0 0.0
    %510 = vmatpush1.msra.mxu0 %v65
    %511 = vmatprep.subr.mxu0 0.0
    %512 = vmatpush1.msra.mxu0 %v64
    %513 = vmatprep.subr.mxu0 0.0
    %514 = vmatpush2.msra.mxu0 0.0
    %515 = vmatprep.subr.mxu0 0.0
    %516 = vmatpush2.msra.mxu0 0.0
    %517 = vmatprep.subr.mxu0 0.0
    %518 = vmatpush2.msra.mxu0 0.0
    %519 = vmatprep.subr.mxu0 0.0
    %520 = vmatpush2.msra.mxu0 0.0
    %521 = vmatprep.subr.mxu0 0.0
    %522 = vmatpush2.msra.mxu0 0.0
    %523 = vmatprep.subr.mxu0 0.0
    %524 = vmatpush2.msra.mxu0 0.0
    %525 = vmatprep.subr.mxu0 0.0
    %526 = vmatpush2.msra.mxu0 0.0
    %527 = vmatprep.subr.mxu0 0.0
    %528 = vmatpush2.msra.mxu0 0.0
    %529 = vmatprep.subr.mxu0 0.0
    %530 = vmatpush2.msra.mxu0 0.0
    %531 = vmatprep.subr.mxu0 0.0
    %532 = vmatpush2.msra.mxu0 0.0
    %533 = vmatprep.subr.mxu0 0.0
    %534 = vmatpush2.msra.mxu0 0.0
    %535 = vmatprep.subr.mxu0 0.0
    %536 = vmatpush2.msra.mxu0 0.0
    %537 = vmatprep.subr.mxu0 0.0
    %538 = vmatpush2.msra.mxu0 0.0
    %539 = vmatprep.subr.mxu0 0.0
    %540 = vmatpush2.msra.mxu0 0.0
    %541 = vmatprep.subr.mxu0 0.0
    %542 = vmatpush2.msra.mxu0 0.0
    %543 = vmatprep.subr.mxu0 0.0
    %544 = vmatpush2.msra.mxu0 0.0
    %545 = vmatprep.mubr.f32.mxu0 0.0
    %546 = vmatmul.mubr.f32.gmra.mxu0 %v469
    %v547 = vpop.f32.mrf.mxu0
    %v548 = vadd.f32 %v480, %v547
    %v549 = vpop.f32.mrf.mxu0
    %550 = vmatprep.mubr.f32.mxu0 0.0
    %551 = vmatmul.mubr.f32.gmra.mxu0 %v470
    %v552 = vpop.f32.mrf.mxu0
    %v553 = vadd.f32 %v480, %v552
    %v554 = vpop.f32.mrf.mxu0
    %555 = vmatprep.mubr.f32.mxu0 0.0
    %556 = vmatmul.mubr.f32.gmra.mxu0 %v471
    %v557 = vpop.f32.mrf.mxu0
    %v558 = vadd.f32 %v480, %v557
    %v559 = vpop.f32.mrf.mxu0
    %560 = vmatprep.mubr.f32.mxu0 0.0
    %561 = vmatmul.mubr.f32.gmra.mxu0 %v472
    %v562 = vpop.f32.mrf.mxu0
    %v563 = vadd.f32 %v480, %v562
    %v564 = vpop.f32.mrf.mxu0
    %565 = vmatprep.mubr.f32.mxu0 0.0
    %566 = vmatmul.mubr.f32.gmra.mxu0 %v473
    %v567 = vpop.f32.mrf.mxu0
    %v568 = vadd.f32 %v480, %v567
    %v569 = vpop.f32.mrf.mxu0
    %570 = vmatprep.mubr.f32.mxu0 0.0
    %571 = vmatmul.mubr.f32.gmra.mxu0 %v474
    %v572 = vpop.f32.mrf.mxu0
    %v573 = vadd.f32 %v480, %v572
    %v574 = vpop.f32.mrf.mxu0
    %575 = vmatprep.mubr.f32.mxu0 0.0
    %576 = vmatmul.mubr.f32.gmra.mxu0 %v475
    %v577 = vpop.f32.mrf.mxu0
    %v578 = vadd.f32 %v480, %v577
    %v579 = vpop.f32.mrf.mxu0
    %580 = vmatprep.mubr.f32.mxu0 0.0
    %581 = vmatmul.mubr.f32.gmra.mxu0 %v476
    %v582 = vpop.f32.mrf.mxu0
    %v583 = vadd.f32 %v480, %v582
    %v584 = vpop.f32.mrf.mxu0
    %585 = vdwg.mxu0
    %v586 = vld [vmem:[%s1] sm:$0xff]
    %vm587 = vcmask 261120
    %v589 = vsel %vm587, %v586, 0
    %591 = vmatprep.subr.mxu0 0.0
    %592 = vmatpush1.msra.mxu0 0.0
    %593 = vmatprep.subr.mxu0 0.0
    %594 = vmatpush1.msra.mxu0 0.0
    %595 = vmatprep.subr.mxu0 0.0
    %596 = vmatpush1.msra.mxu0 0.0
    %597 = vmatprep.subr.mxu0 0.0
    %598 = vmatpush1.msra.mxu0 0.0
    %599 = vmatprep.subr.mxu0 0.0
    %600 = vmatpush1.msra.mxu0 0.0
    %601 = vmatprep.subr.mxu0 0.0
    %602 = vmatpush1.msra.mxu0 0.0
    %603 = vmatprep.subr.mxu0 0.0
    %604 = vmatpush1.msra.mxu0 0.0
    %605 = vmatprep.subr.mxu0 0.0
    %606 = vmatpush1.msra.mxu0 0.0
    %607 = vmatprep.subr.mxu0 0.0
    %608 = vmatpush1.msra.mxu0 0.0
    %609 = vmatprep.subr.mxu0 0.0
    %610 = vmatpush1.msra.mxu0 0.0
    %611 = vmatprep.subr.mxu0 0.0
    %612 = vmatpush1.msra.mxu0 0.0
    %613 = vmatprep.subr.mxu0 0.0
    %614 = vmatpush1.msra.mxu0 0.0
    %615 = vmatprep.subr.mxu0 0.0
    %616 = vmatpush1.msra.mxu0 %v83
    %617 = vmatprep.subr.mxu0 0.0
    %618 = vmatpush1.msra.mxu0 %v82
    %619 = vmatprep.subr.mxu0 0.0
    %620 = vmatpush1.msra.mxu0 %v81
    %621 = vmatprep.subr.mxu0 0.0
    %622 = vmatpush1.msra.mxu0 %v80
    %623 = vmatprep.subr.mxu0 0.0
    %624 = vmatpush2.msra.mxu0 0.0
    %625 = vmatprep.subr.mxu0 0.0
    %626 = vmatpush2.msra.mxu0 0.0
    %627 = vmatprep.subr.mxu0 0.0
    %628 = vmatpush2.msra.mxu0 0.0
    %629 = vmatprep.subr.mxu0 0.0
    %630 = vmatpush2.msra.mxu0 0.0
    %631 = vmatprep.subr.mxu0 0.0
    %632 = vmatpush2.msra.mxu0 0.0
    %633 = vmatprep.subr.mxu0 0.0
    %634 = vmatpush2.msra.mxu0 0.0
    %635 = vmatprep.subr.mxu0 0.0
    %636 = vmatpush2.msra.mxu0 0.0
    %637 = vmatprep.subr.mxu0 0.0
    %638 = vmatpush2.msra.mxu0 0.0
    %639 = vmatprep.subr.mxu0 0.0
    %640 = vmatpush2.msra.mxu0 0.0
    %641 = vmatprep.subr.mxu0 0.0
    %642 = vmatpush2.msra.mxu0 0.0
    %643 = vmatprep.subr.mxu0 0.0
    %644 = vmatpush2.msra.mxu0 0.0
    %645 = vmatprep.subr.mxu0 0.0
    %646 = vmatpush2.msra.mxu0 0.0
    %647 = vmatprep.subr.mxu0 0.0
    %648 = vmatpush2.msra.mxu0 0.0
    %649 = vmatprep.subr.mxu0 0.0
    %650 = vmatpush2.msra.mxu0 0.0
    %651 = vmatprep.subr.mxu0 0.0
    %652 = vmatpush2.msra.mxu0 0.0
    %653 = vmatprep.subr.mxu0 0.0
    %654 = vmatpush2.msra.mxu0 0.0
    %655 = vmatprep.mubr.f32.mxu0 0.0
    %656 = vmatmul.mubr.f32.gmra.mxu0 %v589
    %v657 = vpop.f32.mrf.mxu0
    %v658 = vadd.f32 0.0, %v657
    %v659 = vpop.f32.mrf.mxu0
    %660 = vdwg.mxu0
    %v661 = vadd.f32 %v548, %v658
    %v662 = vtanh.pop %v661
    %v663 = vmul.f32 %v662, 0.5
    %v664 = vadd.f32 %v663, 0.5
    %v665 = vmul.f32 %v664, %v586
    %667 = vrot.lane.b32.xlu0 %v662, 64
    %v668 = vpop.permute.xlu0 %667
    %v670 = vmul.f32 %v664, %v668
    %672 = vrot.lane.b32.xlu0 %v670, 32
    %v673 = vpop.permute.xlu0 %672
    %v675 = vadd.f32 %v665, %v673
    %v676 = vtanh.pop %v675
    %678 = vrot.lane.b32.xlu0 %v676, 64
    %v679 = vpop.permute.xlu0 %678
    %v681 = vmul.f32 %v664, %v679
    %683 = vrot.lane.b32.xlu0 %v681, 32
    %v684 = vpop.permute.xlu0 %683
    %v685 = vsel %vm587, %v684, 0
    %687 = vmatprep.subr.mxu0 0.0
    %688 = vmatpush1.msra.mxu0 0.0
    %689 = vmatprep.subr.mxu0 0.0
    %690 = vmatpush1.msra.mxu0 0.0
    %691 = vmatprep.subr.mxu0 0.0
    %692 = vmatpush1.msra.mxu0 0.0
    %693 = vmatprep.subr.mxu0 0.0
    %694 = vmatpush1.msra.mxu0 0.0
    %695 = vmatprep.subr.mxu0 0.0
    %696 = vmatpush1.msra.mxu0 0.0
    %697 = vmatprep.subr.mxu0 0.0
    %698 = vmatpush1.msra.mxu0 0.0
    %699 = vmatprep.subr.mxu0 0.0
    %700 = vmatpush1.msra.mxu0 0.0
    %701 = vmatprep.subr.mxu0 0.0
    %702 = vmatpush1.msra.mxu0 0.0
    %703 = vmatprep.subr.mxu0 0.0
    %704 = vmatpush1.msra.mxu0 0.0
    %705 = vmatprep.subr.mxu0 0.0
    %706 = vmatpush1.msra.mxu0 0.0
    %707 = vmatprep.subr.mxu0 0.0
    %708 = vmatpush1.msra.mxu0 0.0
    %709 = vmatprep.subr.mxu0 0.0
    %710 = vmatpush1.msra.mxu0 0.0
    %711 = vmatprep.subr.mxu0 0.0
    %712 = vmatpush1.msra.mxu0 %v83
    %713 = vmatprep.subr.mxu0 0.0
    %714 = vmatpush1.msra.mxu0 %v82
    %715 = vmatprep.subr.mxu0 0.0
    %716 = vmatpush1.msra.mxu0 %v81
    %717 = vmatprep.subr.mxu0 0.0
    %718 = vmatpush1.msra.mxu0 %v80
    %719 = vmatprep.subr.mxu0 0.0
    %720 = vmatpush2.msra.mxu0 0.0
    %721 = vmatprep.subr.mxu0 0.0
    %722 = vmatpush2.msra.mxu0 0.0
    %723 = vmatprep.subr.mxu0 0.0
    %724 = vmatpush2.msra.mxu0 0.0
    %725 = vmatprep.subr.mxu0 0.0
    %726 = vmatpush2.msra.mxu0 0.0
    %727 = vmatprep.subr.mxu0 0.0
    %728 = vmatpush2.msra.mxu0 0.0
    %729 = vmatprep.subr.mxu0 0.0
    %730 = vmatpush2.msra.mxu0 0.0
    %731 = vmatprep.subr.mxu0 0.0
    %732 = vmatpush2.msra.mxu0 0.0
    %733 = vmatprep.subr.mxu0 0.0
    %734 = vmatpush2.msra.mxu0 0.0
    %735 = vmatprep.subr.mxu0 0.0
    %736 = vmatpush2.msra.mxu0 0.0
    %737 = vmatprep.subr.mxu0 0.0
    %738 = vmatpush2.msra.mxu0 0.0
    %739 = vmatprep.subr.mxu0 0.0
    %740 = vmatpush2.msra.mxu0 0.0
    %741 = vmatprep.subr.mxu0 0.0
    %742 = vmatpush2.msra.mxu0 0.0
    %743 = vmatprep.subr.mxu0 0.0
    %744 = vmatpush2.msra.mxu0 0.0
    %745 = vmatprep.subr.mxu0 0.0
    %746 = vmatpush2.msra.mxu0 0.0
    %747 = vmatprep.subr.mxu0 0.0
    %748 = vmatpush2.msra.mxu0 0.0
    %749 = vmatprep.subr.mxu0 0.0
    %750 = vmatpush2.msra.mxu0 0.0
    %751 = vmatprep.mubr.f32.mxu0 0.0
    %752 = vmatmul.mubr.f32.gmra.mxu0 %v685
    %v753 = vpop.f32.mrf.mxu0
    %v754 = vadd.f32 0.0, %v753
    %v755 = vpop.f32.mrf.mxu0
    %756 = vdwg.mxu0
    %v757 = vadd.f32 %v553, %v754
    %v758 = vtanh.pop %v757
    %v759 = vmul.f32 %v758, 0.5
    %v760 = vadd.f32 %v759, 0.5
    %v761 = vmul.f32 %v760, %v675
    %763 = vrot.lane.b32.xlu0 %v758, 64
    %v764 = vpop.permute.xlu0 %763
    %v766 = vmul.f32 %v760, %v764
    %768 = vrot.lane.b32.xlu0 %v766, 32
    %v769 = vpop.permute.xlu0 %768
    %v771 = vadd.f32 %v761, %v769
    %v772 = vtanh.pop %v771
    %774 = vrot.lane.b32.xlu0 %v772, 64
    %v775 = vpop.permute.xlu0 %774
    %v777 = vmul.f32 %v760, %v775
    %779 = vrot.lane.b32.xlu0 %v777, 32
    %v780 = vpop.permute.xlu0 %779
    %v781 = vsel %vm587, %v780, 0
    %783 = vmatprep.subr.mxu0 0.0
    %784 = vmatpush1.msra.mxu0 0.0
    %785 = vmatprep.subr.mxu0 0.0
    %786 = vmatpush1.msra.mxu0 0.0
    %787 = vmatprep.subr.mxu0 0.0
    %788 = vmatpush1.msra.mxu0 0.0
    %789 = vmatprep.subr.mxu0 0.0
    %790 = vmatpush1.msra.mxu0 0.0
    %791 = vmatprep.subr.mxu0 0.0
    %792 = vmatpush1.msra.mxu0 0.0
    %793 = vmatprep.subr.mxu0 0.0
    %794 = vmatpush1.msra.mxu0 0.0
    %795 = vmatprep.subr.mxu0 0.0
    %796 = vmatpush1.msra.mxu0 0.0
    %797 = vmatprep.subr.mxu0 0.0
    %798 = vmatpush1.msra.mxu0 0.0
    %799 = vmatprep.subr.mxu0 0.0
    %800 = vmatpush1.msra.mxu0 0.0
    %801 = vmatprep.subr.mxu0 0.0
    %802 = vmatpush1.msra.mxu0 0.0
    %803 = vmatprep.subr.mxu0 0.0
    %804 = vmatpush1.msra.mxu0 0.0
    %805 = vmatprep.subr.mxu0 0.0
    %806 = vmatpush1.msra.mxu0 0.0
    %807 = vmatprep.subr.mxu0 0.0
    %808 = vmatpush1.msra.mxu0 %v83
    %809 = vmatprep.subr.mxu0 0.0
    %810 = vmatpush1.msra.mxu0 %v82
    %811 = vmatprep.subr.mxu0 0.0
    %812 = vmatpush1.msra.mxu0 %v81
    %813 = vmatprep.subr.mxu0 0.0
    %814 = vmatpush1.msra.mxu0 %v80
    %815 = vmatprep.subr.mxu0 0.0
    %816 = vmatpush2.msra.mxu0 0.0
    %817 = vmatprep.subr.mxu0 0.0
    %818 = vmatpush2.msra.mxu0 0.0
    %819 = vmatprep.subr.mxu0 0.0
    %820 = vmatpush2.msra.mxu0 0.0
    %821 = vmatprep.subr.mxu0 0.0
    %822 = vmatpush2.msra.mxu0 0.0
    %823 = vmatprep.subr.mxu0 0.0
    %824 = vmatpush2.msra.mxu0 0.0
    %825 = vmatprep.subr.mxu0 0.0
    %826 = vmatpush2.msra.mxu0 0.0
    %827 = vmatprep.subr.mxu0 0.0
    %828 = vmatpush2.msra.mxu0 0.0
    %829 = vmatprep.subr.mxu0 0.0
    %830 = vmatpush2.msra.mxu0 0.0
    %831 = vmatprep.subr.mxu0 0.0
    %832 = vmatpush2.msra.mxu0 0.0
    %833 = vmatprep.subr.mxu0 0.0
    %834 = vmatpush2.msra.mxu0 0.0
    %835 = vmatprep.subr.mxu0 0.0
    %836 = vmatpush2.msra.mxu0 0.0
    %837 = vmatprep.subr.mxu0 0.0
    %838 = vmatpush2.msra.mxu0 0.0
    %839 = vmatprep.subr.mxu0 0.0
    %840 = vmatpush2.msra.mxu0 0.0
    %841 = vmatprep.subr.mxu0 0.0
    %842 = vmatpush2.msra.mxu0 0.0
    %843 = vmatprep.subr.mxu0 0.0
    %844 = vmatpush2.msra.mxu0 0.0
    %845 = vmatprep.subr.mxu0 0.0
    %846 = vmatpush2.msra.mxu0 0.0
    %847 = vmatprep.mubr.f32.mxu0 0.0
    %848 = vmatmul.mubr.f32.gmra.mxu0 %v781
    %v849 = vpop.f32.mrf.mxu0
    %v850 = vadd.f32 0.0, %v849
    %v851 = vpop.f32.mrf.mxu0
    %852 = vdwg.mxu0
    %v853 = vadd.f32 %v558, %v850
    %v854 = vtanh.pop %v853
    %v855 = vmul.f32 %v854, 0.5
    %v856 = vadd.f32 %v855, 0.5
    %v857 = vmul.f32 %v856, %v771
    %859 = vrot.lane.b32.xlu0 %v854, 64
    %v860 = vpop.permute.xlu0 %859
    %v862 = vmul.f32 %v856, %v860
    %864 = vrot.lane.b32.xlu0 %v862, 32
    %v865 = vpop.permute.xlu0 %864
    %v867 = vadd.f32 %v857, %v865
    %v868 = vtanh.pop %v867
    %870 = vrot.lane.b32.xlu0 %v868, 64
    %v871 = vpop.permute.xlu0 %870
    %v873 = vmul.f32 %v856, %v871
    %875 = vrot.lane.b32.xlu0 %v873, 32
    %v876 = vpop.permute.xlu0 %875
    %v877 = vsel %vm587, %v876, 0
    %879 = vmatprep.subr.mxu0 0.0
    %880 = vmatpush1.msra.mxu0 0.0
    %881 = vmatprep.subr.mxu0 0.0
    %882 = vmatpush1.msra.mxu0 0.0
    %883 = vmatprep.subr.mxu0 0.0
    %884 = vmatpush1.msra.mxu0 0.0
    %885 = vmatprep.subr.mxu0 0.0
    %886 = vmatpush1.msra.mxu0 0.0
    %887 = vmatprep.subr.mxu0 0.0
    %888 = vmatpush1.msra.mxu0 0.0
    %889 = vmatprep.subr.mxu0 0.0
    %890 = vmatpush1.msra.mxu0 0.0
    %891 = vmatprep.subr.mxu0 0.0
    %892 = vmatpush1.msra.mxu0 0.0
    %893 = vmatprep.subr.mxu0 0.0
    %894 = vmatpush1.msra.mxu0 0.0
    %895 = vmatprep.subr.mxu0 0.0
    %896 = vmatpush1.msra.mxu0 0.0
    %897 = vmatprep.subr.mxu0 0.0
    %898 = vmatpush1.msra.mxu0 0.0
    %899 = vmatprep.subr.mxu0 0.0
    %900 = vmatpush1.msra.mxu0 0.0
    %901 = vmatprep.subr.mxu0 0.0
    %902 = vmatpush1.msra.mxu0 0.0
    %903 = vmatprep.subr.mxu0 0.0
    %904 = vmatpush1.msra.mxu0 %v83
    %905 = vmatprep.subr.mxu0 0.0
    %906 = vmatpush1.msra.mxu0 %v82
    %907 = vmatprep.subr.mxu0 0.0
    %908 = vmatpush1.msra.mxu0 %v81
    %909 = vmatprep.subr.mxu0 0.0
    %910 = vmatpush1.msra.mxu0 %v80
    %911 = vmatprep.subr.mxu0 0.0
    %912 = vmatpush2.msra.mxu0 0.0
    %913 = vmatprep.subr.mxu0 0.0
    %914 = vmatpush2.msra.mxu0 0.0
    %915 = vmatprep.subr.mxu0 0.0
    %916 = vmatpush2.msra.mxu0 0.0
    %917 = vmatprep.subr.mxu0 0.0
    %918 = vmatpush2.msra.mxu0 0.0
    %919 = vmatprep.subr.mxu0 0.0
    %920 = vmatpush2.msra.mxu0 0.0
    %921 = vmatprep.subr.mxu0 0.0
    %922 = vmatpush2.msra.mxu0 0.0
    %923 = vmatprep.subr.mxu0 0.0
    %924 = vmatpush2.msra.mxu0 0.0
    %925 = vmatprep.subr.mxu0 0.0
    %926 = vmatpush2.msra.mxu0 0.0
    %927 = vmatprep.subr.mxu0 0.0
    %928 = vmatpush2.msra.mxu0 0.0
    %929 = vmatprep.subr.mxu0 0.0
    %930 = vmatpush2.msra.mxu0 0.0
    %931 = vmatprep.subr.mxu0 0.0
    %932 = vmatpush2.msra.mxu0 0.0
    %933 = vmatprep.subr.mxu0 0.0
    %934 = vmatpush2.msra.mxu0 0.0
    %935 = vmatprep.subr.mxu0 0.0
    %936 = vmatpush2.msra.mxu0 0.0
    %937 = vmatprep.subr.mxu0 0.0
    %938 = vmatpush2.msra.mxu0 0.0
    %939 = vmatprep.subr.mxu0 0.0
    %940 = vmatpush2.msra.mxu0 0.0
    %941 = vmatprep.subr.mxu0 0.0
    %942 = vmatpush2.msra.mxu0 0.0
    %943 = vmatprep.mubr.f32.mxu0 0.0
    %944 = vmatmul.mubr.f32.gmra.mxu0 %v877
    %v945 = vpop.f32.mrf.mxu0
    %v946 = vadd.f32 0.0, %v945
    %v947 = vpop.f32.mrf.mxu0
    %948 = vdwg.mxu0
    %v949 = vadd.f32 %v563, %v946
    %v950 = vtanh.pop %v949
    %v951 = vmul.f32 %v950, 0.5
    %v952 = vadd.f32 %v951, 0.5
    %v953 = vmul.f32 %v952, %v867
    %955 = vrot.lane.b32.xlu0 %v950, 64
    %v956 = vpop.permute.xlu0 %955
    %v958 = vmul.f32 %v952, %v956
    %960 = vrot.lane.b32.xlu0 %v958, 32
    %v961 = vpop.permute.xlu0 %960
    %v963 = vadd.f32 %v953, %v961
    %v964 = vtanh.pop %v963
    %966 = vrot.lane.b32.xlu0 %v964, 64
    %v967 = vpop.permute.xlu0 %966
    %v969 = vmul.f32 %v952, %v967
    %971 = vrot.lane.b32.xlu0 %v969, 32
    %v972 = vpop.permute.xlu0 %971
    %v973 = vsel %vm587, %v972, 0
    %975 = vmatprep.subr.mxu0 0.0
    %976 = vmatpush1.msra.mxu0 0.0
    %977 = vmatprep.subr.mxu0 0.0
    %978 = vmatpush1.msra.mxu0 0.0
    %979 = vmatprep.subr.mxu0 0.0
    %980 = vmatpush1.msra.mxu0 0.0
    %981 = vmatprep.subr.mxu0 0.0
    %982 = vmatpush1.msra.mxu0 0.0
    %983 = vmatprep.subr.mxu0 0.0
    %984 = vmatpush1.msra.mxu0 0.0
    %985 = vmatprep.subr.mxu0 0.0
    %986 = vmatpush1.msra.mxu0 0.0
    %987 = vmatprep.subr.mxu0 0.0
    %988 = vmatpush1.msra.mxu0 0.0
    %989 = vmatprep.subr.mxu0 0.0
    %990 = vmatpush1.msra.mxu0 0.0
    %991 = vmatprep.subr.mxu0 0.0
    %992 = vmatpush1.msra.mxu0 0.0
    %993 = vmatprep.subr.mxu0 0.0
    %994 = vmatpush1.msra.mxu0 0.0
    %995 = vmatprep.subr.mxu0 0.0
    %996 = vmatpush1.msra.mxu0 0.0
    %997 = vmatprep.subr.mxu0 0.0
    %998 = vmatpush1.msra.mxu0 0.0
    %999 = vmatprep.subr.mxu0 0.0
    %1000 = vmatpush1.msra.mxu0 %v83
    %1001 = vmatprep.subr.mxu0 0.0
    %1002 = vmatpush1.msra.mxu0 %v82
    %1003 = vmatprep.subr.mxu0 0.0
    %1004 = vmatpush1.msra.mxu0 %v81
    %1005 = vmatprep.subr.mxu0 0.0
    %1006 = vmatpush1.msra.mxu0 %v80
    %1007 = vmatprep.subr.mxu0 0.0
    %1008 = vmatpush2.msra.mxu0 0.0
    %1009 = vmatprep.subr.mxu0 0.0
    %1010 = vmatpush2.msra.mxu0 0.0
    %1011 = vmatprep.subr.mxu0 0.0
    %1012 = vmatpush2.msra.mxu0 0.0
    %1013 = vmatprep.subr.mxu0 0.0
    %1014 = vmatpush2.msra.mxu0 0.0
    %1015 = vmatprep.subr.mxu0 0.0
    %1016 = vmatpush2.msra.mxu0 0.0
    %1017 = vmatprep.subr.mxu0 0.0
    %1018 = vmatpush2.msra.mxu0 0.0
    %1019 = vmatprep.subr.mxu0 0.0
    %1020 = vmatpush2.msra.mxu0 0.0
    %1021 = vmatprep.subr.mxu0 0.0
    %1022 = vmatpush2.msra.mxu0 0.0
    %1023 = vmatprep.subr.mxu0 0.0
    %1024 = vmatpush2.msra.mxu0 0.0
    %1025 = vmatprep.subr.mxu0 0.0
    %1026 = vmatpush2.msra.mxu0 0.0
    %1027 = vmatprep.subr.mxu0 0.0
    %1028 = vmatpush2.msra.mxu0 0.0
    %1029 = vmatprep.subr.mxu0 0.0
    %1030 = vmatpush2.msra.mxu0 0.0
    %1031 = vmatprep.subr.mxu0 0.0
    %1032 = vmatpush2.msra.mxu0 0.0
    %1033 = vmatprep.subr.mxu0 0.0
    %1034 = vmatpush2.msra.mxu0 0.0
    %1035 = vmatprep.subr.mxu0 0.0
    %1036 = vmatpush2.msra.mxu0 0.0
    %1037 = vmatprep.subr.mxu0 0.0
    %1038 = vmatpush2.msra.mxu0 0.0
    %1039 = vmatprep.mubr.f32.mxu0 0.0
    %1040 = vmatmul.mubr.f32.gmra.mxu0 %v973
    %v1041 = vpop.f32.mrf.mxu0
    %v1042 = vadd.f32 0.0, %v1041
    %v1043 = vpop.f32.mrf.mxu0
    %1044 = vdwg.mxu0
    %v1045 = vadd.f32 %v568, %v1042
    %v1046 = vtanh.pop %v1045
    %v1047 = vmul.f32 %v1046, 0.5
    %v1048 = vadd.f32 %v1047, 0.5
    %v1049 = vmul.f32 %v1048, %v963
    %1051 = vrot.lane.b32.xlu0 %v1046, 64
    %v1052 = vpop.permute.xlu0 %1051
    %v1054 = vmul.f32 %v1048, %v1052
    %1056 = vrot.lane.b32.xlu0 %v1054, 32
    %v1057 = vpop.permute.xlu0 %1056
    %v1059 = vadd.f32 %v1049, %v1057
    %v1060 = vtanh.pop %v1059
    %1062 = vrot.lane.b32.xlu0 %v1060, 64
    %v1063 = vpop.permute.xlu0 %1062
    %v1065 = vmul.f32 %v1048, %v1063
    %1067 = vrot.lane.b32.xlu0 %v1065, 32
    %v1068 = vpop.permute.xlu0 %1067
    %v1069 = vsel %vm587, %v1068, 0
    %1071 = vmatprep.subr.mxu0 0.0
    %1072 = vmatpush1.msra.mxu0 0.0
    %1073 = vmatprep.subr.mxu0 0.0
    %1074 = vmatpush1.msra.mxu0 0.0
    %1075 = vmatprep.subr.mxu0 0.0
    %1076 = vmatpush1.msra.mxu0 0.0
    %1077 = vmatprep.subr.mxu0 0.0
    %1078 = vmatpush1.msra.mxu0 0.0
    %1079 = vmatprep.subr.mxu0 0.0
    %1080 = vmatpush1.msra.mxu0 0.0
    %1081 = vmatprep.subr.mxu0 0.0
    %1082 = vmatpush1.msra.mxu0 0.0
    %1083 = vmatprep.subr.mxu0 0.0
    %1084 = vmatpush1.msra.mxu0 0.0
    %1085 = vmatprep.subr.mxu0 0.0
    %1086 = vmatpush1.msra.mxu0 0.0
    %1087 = vmatprep.subr.mxu0 0.0
    %1088 = vmatpush1.msra.mxu0 0.0
    %1089 = vmatprep.subr.mxu0 0.0
    %1090 = vmatpush1.msra.mxu0 0.0
    %1091 = vmatprep.subr.mxu0 0.0
    %1092 = vmatpush1.msra.mxu0 0.0
    %1093 = vmatprep.subr.mxu0 0.0
    %1094 = vmatpush1.msra.mxu0 0.0
    %1095 = vmatprep.subr.mxu0 0.0
    %1096 = vmatpush1.msra.mxu0 %v83
    %1097 = vmatprep.subr.mxu0 0.0
    %1098 = vmatpush1.msra.mxu0 %v82
    %1099 = vmatprep.subr.mxu0 0.0
    %1100 = vmatpush1.msra.mxu0 %v81
    %1101 = vmatprep.subr.mxu0 0.0
    %1102 = vmatpush1.msra.mxu0 %v80
    %1103 = vmatprep.subr.mxu0 0.0
    %1104 = vmatpush2.msra.mxu0 0.0
    %1105 = vmatprep.subr.mxu0 0.0
    %1106 = vmatpush2.msra.mxu0 0.0
    %1107 = vmatprep.subr.mxu0 0.0
    %1108 = vmatpush2.msra.mxu0 0.0
    %1109 = vmatprep.subr.mxu0 0.0
    %1110 = vmatpush2.msra.mxu0 0.0
    %1111 = vmatprep.subr.mxu0 0.0
    %1112 = vmatpush2.msra.mxu0 0.0
    %1113 = vmatprep.subr.mxu0 0.0
    %1114 = vmatpush2.msra.mxu0 0.0
    %1115 = vmatprep.subr.mxu0 0.0
    %1116 = vmatpush2.msra.mxu0 0.0
    %1117 = vmatprep.subr.mxu0 0.0
    %1118 = vmatpush2.msra.mxu0 0.0
    %1119 = vmatprep.subr.mxu0 0.0
    %1120 = vmatpush2.msra.mxu0 0.0
    %1121 = vmatprep.subr.mxu0 0.0
    %1122 = vmatpush2.msra.mxu0 0.0
    %1123 = vmatprep.subr.mxu0 0.0
    %1124 = vmatpush2.msra.mxu0 0.0
    %1125 = vmatprep.subr.mxu0 0.0
    %1126 = vmatpush2.msra.mxu0 0.0
    %1127 = vmatprep.subr.mxu0 0.0
    %1128 = vmatpush2.msra.mxu0 0.0
    %1129 = vmatprep.subr.mxu0 0.0
    %1130 = vmatpush2.msra.mxu0 0.0
    %1131 = vmatprep.subr.mxu0 0.0
    %1132 = vmatpush2.msra.mxu0 0.0
    %1133 = vmatprep.subr.mxu0 0.0
    %1134 = vmatpush2.msra.mxu0 0.0
    %1135 = vmatprep.mubr.f32.mxu0 0.0
    %1136 = vmatmul.mubr.f32.gmra.mxu0 %v1069
    %v1137 = vpop.f32.mrf.mxu0
    %v1138 = vadd.f32 0.0, %v1137
    %v1139 = vpop.f32.mrf.mxu0
    %1140 = vdwg.mxu0
    %v1141 = vadd.f32 %v573, %v1138
    %v1142 = vtanh.pop %v1141
    %v1143 = vmul.f32 %v1142, 0.5
    %v1144 = vadd.f32 %v1143, 0.5
    %v1145 = vmul.f32 %v1144, %v1059
    %1147 = vrot.lane.b32.xlu0 %v1142, 64
    %v1148 = vpop.permute.xlu0 %1147
    %v1150 = vmul.f32 %v1144, %v1148
    %1152 = vrot.lane.b32.xlu0 %v1150, 32
    %v1153 = vpop.permute.xlu0 %1152
    %v1155 = vadd.f32 %v1145, %v1153
    %v1156 = vtanh.pop %v1155
    %1158 = vrot.lane.b32.xlu0 %v1156, 64
    %v1159 = vpop.permute.xlu0 %1158
    %v1161 = vmul.f32 %v1144, %v1159
    %1163 = vrot.lane.b32.xlu0 %v1161, 32
    %v1164 = vpop.permute.xlu0 %1163
    %v1165 = vsel %vm587, %v1164, 0
    %1167 = vmatprep.subr.mxu0 0.0
    %1168 = vmatpush1.msra.mxu0 0.0
    %1169 = vmatprep.subr.mxu0 0.0
    %1170 = vmatpush1.msra.mxu0 0.0
    %1171 = vmatprep.subr.mxu0 0.0
    %1172 = vmatpush1.msra.mxu0 0.0
    %1173 = vmatprep.subr.mxu0 0.0
    %1174 = vmatpush1.msra.mxu0 0.0
    %1175 = vmatprep.subr.mxu0 0.0
    %1176 = vmatpush1.msra.mxu0 0.0
    %1177 = vmatprep.subr.mxu0 0.0
    %1178 = vmatpush1.msra.mxu0 0.0
    %1179 = vmatprep.subr.mxu0 0.0
    %1180 = vmatpush1.msra.mxu0 0.0
    %1181 = vmatprep.subr.mxu0 0.0
    %1182 = vmatpush1.msra.mxu0 0.0
    %1183 = vmatprep.subr.mxu0 0.0
    %1184 = vmatpush1.msra.mxu0 0.0
    %1185 = vmatprep.subr.mxu0 0.0
    %1186 = vmatpush1.msra.mxu0 0.0
    %1187 = vmatprep.subr.mxu0 0.0
    %1188 = vmatpush1.msra.mxu0 0.0
    %1189 = vmatprep.subr.mxu0 0.0
    %1190 = vmatpush1.msra.mxu0 0.0
    %1191 = vmatprep.subr.mxu0 0.0
    %1192 = vmatpush1.msra.mxu0 %v83
    %1193 = vmatprep.subr.mxu0 0.0
    %1194 = vmatpush1.msra.mxu0 %v82
    %1195 = vmatprep.subr.mxu0 0.0
    %1196 = vmatpush1.msra.mxu0 %v81
    %1197 = vmatprep.subr.mxu0 0.0
    %1198 = vmatpush1.msra.mxu0 %v80
    %1199 = vmatprep.subr.mxu0 0.0
    %1200 = vmatpush2.msra.mxu0 0.0
    %1201 = vmatprep.subr.mxu0 0.0
    %1202 = vmatpush2.msra.mxu0 0.0
    %1203 = vmatprep.subr.mxu0 0.0
    %1204 = vmatpush2.msra.mxu0 0.0
    %1205 = vmatprep.subr.mxu0 0.0
    %1206 = vmatpush2.msra.mxu0 0.0
    %1207 = vmatprep.subr.mxu0 0.0
    %1208 = vmatpush2.msra.mxu0 0.0
    %1209 = vmatprep.subr.mxu0 0.0
    %1210 = vmatpush2.msra.mxu0 0.0
    %1211 = vmatprep.subr.mxu0 0.0
    %1212 = vmatpush2.msra.mxu0 0.0
    %1213 = vmatprep.subr.mxu0 0.0
    %1214 = vmatpush2.msra.mxu0 0.0
    %1215 = vmatprep.subr.mxu0 0.0
    %1216 = vmatpush2.msra.mxu0 0.0
    %1217 = vmatprep.subr.mxu0 0.0
    %1218 = vmatpush2.msra.mxu0 0.0
    %1219 = vmatprep.subr.mxu0 0.0
    %1220 = vmatpush2.msra.mxu0 0.0
    %1221 = vmatprep.subr.mxu0 0.0
    %1222 = vmatpush2.msra.mxu0 0.0
    %1223 = vmatprep.subr.mxu0 0.0
    %1224 = vmatpush2.msra.mxu0 0.0
    %1225 = vmatprep.subr.mxu0 0.0
    %1226 = vmatpush2.msra.mxu0 0.0
    %1227 = vmatprep.subr.mxu0 0.0
    %1228 = vmatpush2.msra.mxu0 0.0
    %1229 = vmatprep.subr.mxu0 0.0
    %1230 = vmatpush2.msra.mxu0 0.0
    %1231 = vmatprep.mubr.f32.mxu0 0.0
    %1232 = vmatmul.mubr.f32.gmra.mxu0 %v1165
    %v1233 = vpop.f32.mrf.mxu0
    %v1234 = vadd.f32 0.0, %v1233
    %v1235 = vpop.f32.mrf.mxu0
    %1236 = vdwg.mxu0
    %v1237 = vadd.f32 %v578, %v1234
    %v1238 = vtanh.pop %v1237
    %v1239 = vmul.f32 %v1238, 0.5
    %v1240 = vadd.f32 %v1239, 0.5
    %v1241 = vmul.f32 %v1240, %v1155
    %1243 = vrot.lane.b32.xlu0 %v1238, 64
    %v1244 = vpop.permute.xlu0 %1243
    %v1246 = vmul.f32 %v1240, %v1244
    %1248 = vrot.lane.b32.xlu0 %v1246, 32
    %v1249 = vpop.permute.xlu0 %1248
    %v1251 = vadd.f32 %v1241, %v1249
    %v1252 = vtanh.pop %v1251
    %1254 = vrot.lane.b32.xlu0 %v1252, 64
    %v1255 = vpop.permute.xlu0 %1254
    %v1257 = vmul.f32 %v1240, %v1255
    %1259 = vrot.lane.b32.xlu0 %v1257, 32
    %v1260 = vpop.permute.xlu0 %1259
    %v1261 = vsel %vm587, %v1260, 0
    %1263 = vmatprep.subr.mxu0 0.0
    %1264 = vmatpush1.msra.mxu0 0.0
    %1265 = vmatprep.subr.mxu0 0.0
    %1266 = vmatpush1.msra.mxu0 0.0
    %1267 = vmatprep.subr.mxu0 0.0
    %1268 = vmatpush1.msra.mxu0 0.0
    %1269 = vmatprep.subr.mxu0 0.0
    %1270 = vmatpush1.msra.mxu0 0.0
    %1271 = vmatprep.subr.mxu0 0.0
    %1272 = vmatpush1.msra.mxu0 0.0
    %1273 = vmatprep.subr.mxu0 0.0
    %1274 = vmatpush1.msra.mxu0 0.0
    %1275 = vmatprep.subr.mxu0 0.0
    %1276 = vmatpush1.msra.mxu0 0.0
    %1277 = vmatprep.subr.mxu0 0.0
    %1278 = vmatpush1.msra.mxu0 0.0
    %1279 = vmatprep.subr.mxu0 0.0
    %1280 = vmatpush1.msra.mxu0 0.0
    %1281 = vmatprep.subr.mxu0 0.0
    %1282 = vmatpush1.msra.mxu0 0.0
    %1283 = vmatprep.subr.mxu0 0.0
    %1284 = vmatpush1.msra.mxu0 0.0
    %1285 = vmatprep.subr.mxu0 0.0
    %1286 = vmatpush1.msra.mxu0 0.0
    %1287 = vmatprep.subr.mxu0 0.0
    %1288 = vmatpush1.msra.mxu0 %v83
    %1289 = vmatprep.subr.mxu0 0.0
    %1290 = vmatpush1.msra.mxu0 %v82
    %1291 = vmatprep.subr.mxu0 0.0
    %1292 = vmatpush1.msra.mxu0 %v81
    %1293 = vmatprep.subr.mxu0 0.0
    %1294 = vmatpush1.msra.mxu0 %v80
    %1295 = vmatprep.subr.mxu0 0.0
    %1296 = vmatpush2.msra.mxu0 0.0
    %1297 = vmatprep.subr.mxu0 0.0
    %1298 = vmatpush2.msra.mxu0 0.0
    %1299 = vmatprep.subr.mxu0 0.0
    %1300 = vmatpush2.msra.mxu0 0.0
    %1301 = vmatprep.subr.mxu0 0.0
    %1302 = vmatpush2.msra.mxu0 0.0
    %1303 = vmatprep.subr.mxu0 0.0
    %1304 = vmatpush2.msra.mxu0 0.0
    %1305 = vmatprep.subr.mxu0 0.0
    %1306 = vmatpush2.msra.mxu0 0.0
    %1307 = vmatprep.subr.mxu0 0.0
    %1308 = vmatpush2.msra.mxu0 0.0
    %1309 = vmatprep.subr.mxu0 0.0
    %1310 = vmatpush2.msra.mxu0 0.0
    %1311 = vmatprep.subr.mxu0 0.0
    %1312 = vmatpush2.msra.mxu0 0.0
    %1313 = vmatprep.subr.mxu0 0.0
    %1314 = vmatpush2.msra.mxu0 0.0
    %1315 = vmatprep.subr.mxu0 0.0
    %1316 = vmatpush2.msra.mxu0 0.0
    %1317 = vmatprep.subr.mxu0 0.0
    %1318 = vmatpush2.msra.mxu0 0.0
    %1319 = vmatprep.subr.mxu0 0.0
    %1320 = vmatpush2.msra.mxu0 0.0
    %1321 = vmatprep.subr.mxu0 0.0
    %1322 = vmatpush2.msra.mxu0 0.0
    %1323 = vmatprep.subr.mxu0 0.0
    %1324 = vmatpush2.msra.mxu0 0.0
    %1325 = vmatprep.subr.mxu0 0.0
    %1326 = vmatpush2.msra.mxu0 0.0
    %1327 = vmatprep.mubr.f32.mxu0 0.0
    %1328 = vmatmul.mubr.f32.gmra.mxu0 %v1261
    %v1329 = vpop.f32.mrf.mxu0
    %v1330 = vadd.f32 0.0, %v1329
    %v1331 = vpop.f32.mrf.mxu0
    %1332 = vdwg.mxu0
    %v1333 = vadd.f32 %v583, %v1330
    %v1334 = vtanh.pop %v1333
    %v1335 = vmul.f32 %v1334, 0.5
    %v1336 = vadd.f32 %v1335, 0.5
    %v1337 = vmul.f32 %v1336, %v1251
    %1339 = vrot.lane.b32.xlu0 %v1334, 64
    %v1340 = vpop.permute.xlu0 %1339
    %v1342 = vmul.f32 %v1336, %v1340
    %1344 = vrot.lane.b32.xlu0 %v1342, 32
    %v1345 = vpop.permute.xlu0 %1344
    %v1347 = vadd.f32 %v1337, %v1345
    %v1348 = vtanh.pop %v1347
    %1350 = vrot.lane.b32.xlu0 %v1348, 64
    %v1351 = vpop.permute.xlu0 %1350
    %v1353 = vmul.f32 %v1336, %v1351
    %v1354 = vlaneseq
    %v1355 = vshrl.u32 %v1354, 7
    %v1356 = vsub.s32 0, %v1355
    %v1357 = vrot.slane %v92, %v1356
    %1359 = vrot.lane.b32.xlu0 %v1353, 32
    %v1360 = vpop.permute.xlu0 %1359
    %v1361 = vsel %vm587, %v1360, 0
    %1363 = vmatprep.subr.mxu0 0.0
    %1364 = vmatpush1.msra.mxu0 0.0
    %1365 = vmatprep.subr.mxu0 0.0
    %1366 = vmatpush1.msra.mxu0 0.0
    %1367 = vmatprep.subr.mxu0 0.0
    %1368 = vmatpush1.msra.mxu0 0.0
    %1369 = vmatprep.subr.mxu0 0.0
    %1370 = vmatpush1.msra.mxu0 0.0
    %1371 = vmatprep.subr.mxu0 0.0
    %1372 = vmatpush1.msra.mxu0 0.0
    %1373 = vmatprep.subr.mxu0 0.0
    %1374 = vmatpush1.msra.mxu0 0.0
    %1375 = vmatprep.subr.mxu0 0.0
    %1376 = vmatpush1.msra.mxu0 0.0
    %1377 = vmatprep.subr.mxu0 0.0
    %1378 = vmatpush1.msra.mxu0 0.0
    %1379 = vmatprep.subr.mxu0 0.0
    %1380 = vmatpush1.msra.mxu0 0.0
    %1381 = vmatprep.subr.mxu0 0.0
    %1382 = vmatpush1.msra.mxu0 0.0
    %1383 = vmatprep.subr.mxu0 0.0
    %1384 = vmatpush1.msra.mxu0 0.0
    %1385 = vmatprep.subr.mxu0 0.0
    %1386 = vmatpush1.msra.mxu0 0.0
    %1387 = vmatprep.subr.mxu0 0.0
    %1388 = vmatpush1.msra.mxu0 %v87
    %1389 = vmatprep.subr.mxu0 0.0
    %1390 = vmatpush1.msra.mxu0 %v86
    %1391 = vmatprep.subr.mxu0 0.0
    %1392 = vmatpush1.msra.mxu0 %v85
    %1393 = vmatprep.subr.mxu0 0.0
    %1394 = vmatpush1.msra.mxu0 %v84
    %1395 = vmatprep.subr.mxu0 0.0
    %1396 = vmatpush2.msra.mxu0 0.0
    %1397 = vmatprep.subr.mxu0 0.0
    %1398 = vmatpush2.msra.mxu0 0.0
    %1399 = vmatprep.subr.mxu0 0.0
    %1400 = vmatpush2.msra.mxu0 0.0
    %1401 = vmatprep.subr.mxu0 0.0
    %1402 = vmatpush2.msra.mxu0 0.0
    %1403 = vmatprep.subr.mxu0 0.0
    %1404 = vmatpush2.msra.mxu0 0.0
    %1405 = vmatprep.subr.mxu0 0.0
    %1406 = vmatpush2.msra.mxu0 0.0
    %1407 = vmatprep.subr.mxu0 0.0
    %1408 = vmatpush2.msra.mxu0 0.0
    %1409 = vmatprep.subr.mxu0 0.0
    %1410 = vmatpush2.msra.mxu0 0.0
    %1411 = vmatprep.subr.mxu0 0.0
    %1412 = vmatpush2.msra.mxu0 0.0
    %1413 = vmatprep.subr.mxu0 0.0
    %1414 = vmatpush2.msra.mxu0 0.0
    %1415 = vmatprep.subr.mxu0 0.0
    %1416 = vmatpush2.msra.mxu0 0.0
    %1417 = vmatprep.subr.mxu0 0.0
    %1418 = vmatpush2.msra.mxu0 0.0
    %1419 = vmatprep.subr.mxu0 0.0
    %1420 = vmatpush2.msra.mxu0 0.0
    %1421 = vmatprep.subr.mxu0 0.0
    %1422 = vmatpush2.msra.mxu0 0.0
    %1423 = vmatprep.subr.mxu0 0.0
    %1424 = vmatpush2.msra.mxu0 0.0
    %1425 = vmatprep.subr.mxu0 0.0
    %1426 = vmatpush2.msra.mxu0 0.0
    %1427 = vmatprep.mubr.f32.mxu0 0.0
    %1428 = vmatmul.mubr.f32.gmra.mxu0 %v1361
    %v1429 = vpop.f32.mrf.mxu0
    %v1430 = vadd.f32 %v1357, %v1429
    %v1431 = vpop.f32.mrf.mxu0
    %1432 = vdwg.mxu0
    %1434 = vset.pattern.permute.xlu0 5
    %1435 = vperm.xlu0 %1434, %v1430
    %v1436 = vpop.permute.xlu0 %1435
    %v1438 = vadd.f32 %v1436, %v1430
    %vm1439 = vcmask 39936
    %v1440 = vsel %vm1439, %v1430, 0.0
    %1441 = vadd.xlane.f32.xlu0 %v1440
    %v1442 = vpop.xlane.xlu0 %1441
    %v1443 = vrcp.pop 5.0
    %v1444 = vmul.f32 %v1442, %v1443
    %v1445 = vsub.f32 %v1438, %v1444
    %1446 = vrot.lane.b32.xlu0 %v1353, 64
    %v1447 = vpop.permute.xlu0 %1446
    %1450 = vrot.lane.b32.xlu0 %v1347, 32
    %v1451 = vpop.permute.xlu0 %1450
    %v1453 = vsel %vm1439, %v1445, 0.0
    %v1454 = vsel %vm587, %v1453, %v1447
    %vm1455 = vcmask 523264
    %v1456 = vsel %vm1455, %v1454, %v1451
    %vm1457 = vcmask 785408
    %v1458 = vsel %vm1457, %v1456, 0.0
    %1459 = vst [vmem:[#allocation5] sm:$0xff] %v1458
    // Predicated region
    $region18: #{tpu_custom_call.1} parent=1 // pred_check
      _
    $region19: #{tpu_custom_call.1} parent=1 // pred_check_branch
      %1461 = sbr.rel (0) target = $region21
    $region20: #{tpu_custom_call.1} parent=1 // pred_region
      %s1463 = ssub.s32 128, 128
      %1464 = vsyncadd [#allocation4], %s1463
      %s1466 = sshll.u32 [#allocation5], 4
      %s1467 = int_to_ptr.vmem [resolvable:$true] %s1466
      %1469 = dma.vmem_to_hbm [thread:$0]  %s1467, 128, %s3, [#allocation4]
    $region21: #{tpu_custom_call.1} parent=1 // pred_fallthru
      _
    // Predicated region
    $region22: #{tpu_custom_call.1} parent=1 // pred_check
      _
    $region23: #{tpu_custom_call.1} parent=1 // pred_check_branch
      %1471 = sbr.rel (0) target = $region25
    $region24: #{tpu_custom_call.1} parent=1 // pred_region
      %1472 = dma.done [#allocation4], 128
    $region25: #{tpu_custom_call.1} parent=1 // pred_fallthru
      _
    %1473 = vsyncpa [#allocation3], 1
    %1474 = vsyncpa [#allocation4], 1

</llo_original>
